<compile_context>
chip_gen: v6e
topology: v6e:2x2x1
jax: 0.10.0
libtpu: 0.0.40
codegen_flags: <defaults>
</compile_context>

<pallas_src>
import functools

import jax
import jax.numpy as jnp
from jax.experimental import pallas as pl
from jax.experimental.pallas import tpu as pltpu


def _leaky_relu(x, negative_slope=0.01):
    # Matches torch.nn.functional.leaky_relu_ (default negative_slope=0.01).
    return jnp.where(x > 0, x, negative_slope * x)


def mlp_kernel(x_ref, w1_ref, b1_ref, w2_ref, b2_ref, w3_ref, b3_ref, o_ref):
    """One batch tile of the fused 3-layer MLP.

    x_ref : (TB, 900) f32   streamed per grid step (double-buffered by Pallas)
    w1_ref: (900, 200) bf16 constant index_map -> fetched once, VMEM-resident
    b1_ref: (1, 200) f32
    w2_ref: (200, 20) bf16
    b2_ref: (1, 20) f32
    w3_ref: (1, 20) f32     used as a row for the VPU final contraction
    b3_ref: (1, 1) f32      SMEM scalar
    o_ref : (1, 1, TB) f32  lane-dense output row
    """
    x = x_ref[...].astype(jnp.bfloat16)                    # (TB, 900)

    h1 = jnp.dot(x, w1_ref[...], preferred_element_type=jnp.float32)
    h1 = _leaky_relu(h1 + b1_ref[...])                     # (TB, 200) f32

    h2 = jnp.dot(h1.astype(jnp.bfloat16), w2_ref[...],
                 preferred_element_type=jnp.float32)
    h2 = _leaky_relu(h2 + b2_ref[...])                     # (TB, 20) f32

    # layer_out has N=1: an MXU matmul would waste the array and add push/pop
    # latency on the serial chain, so contract on the VPU + lane reduce instead.
    z = jnp.sum(h2 * w3_ref[...], axis=-1) + b3_ref[0, 0]  # (TB,)
    o_ref[0, 0, :] = _leaky_relu(z)                        # lane-dense store


@functools.partial(jax.jit, static_argnames=("block_b",))
def binary_classification_forward(x, w1, b1, w2, b2, w3, b3, *, block_b=1024):
    """x: (B, 900) f32 -> (B, 1) f32 (leaky_relu'd logit, per the spec)."""
    B, D = x.shape
    # Batch tile: multiple of 128 (lane-dense output), capped at block_b.
    # block_b=1024 keeps the double-buffered f32 x tile (~7.4 MiB) + resident
    # weights (<1 MiB) inside even v5e's 16 MiB default scoped VMEM.
    tb = min(block_b, max(128, ((B + 127) // 128) * 128))
    grid = pl.cdiv(B, tb)
    b_pad = grid * tb
    if b_pad != B:
        x = jnp.pad(x, ((0, b_pad - B), (0, 0)))

    const = lambda a: pl.BlockSpec(a.shape, lambda i: (0,) * a.ndim)

    out = pl.pallas_call(
        mlp_kernel,
        out_shape=jax.ShapeDtypeStruct((grid, 1, tb), jnp.float32),
        grid=(grid,),
        in_specs=[
            pl.BlockSpec((tb, D), lambda i: (i, 0)),   # x: streamed batch tiles
            const(w1), const(b1),                      # resident across steps
            const(w2), const(b2),
            const(w3),
            pl.BlockSpec(memory_space=pltpu.MemorySpace.SMEM),  # b3 scalar
        ],
        out_specs=pl.BlockSpec((1, 1, tb), lambda i: (i, 0, 0)),
        compiler_params=pltpu.CompilerParams(
            # Batch tiles are independent -> shard across v7x's 2 TensorCores.
            dimension_semantics=("parallel",)),
    )(x, w1, b1, w2, b2, w3, b3)

    return out.reshape(-1)[:B].reshape(B, 1)


def init_params(key):
    """torch.nn.Linear-style init: U(-1/sqrt(fan_in), 1/sqrt(fan_in)).
    Matmul weights (w1, w2) are stored in bfloat16 (halves weight HBM traffic,
    MXU-native); the tiny w3 row and all biases stay f32."""
    dims = [(900, 200), (200, 20), (20, 1)]
    params = []
    for li, (fan_in, fan_out) in enumerate(dims):
        key, kw, kb = jax.random.split(key, 3)
        bound = 1.0 / jnp.sqrt(jnp.float32(fan_in))
        w = jax.random.uniform(kw, (fan_in, fan_out), jnp.float32,
                               minval=-bound, maxval=bound)
        b = jax.random.uniform(kb, (1, fan_out), jnp.float32,
                               minval=-bound, maxval=bound)
        if li < 2:
            w = w.astype(jnp.bfloat16)
        else:
            w = w.reshape(1, fan_in)   # (1, 20) row for the VPU final layer
        params += [w, b]
    return params


def reference_forward(x, w1, b1, w2, b2, w3, b3):
    """Plain-JAX reference doing the same arithmetic (bf16 matmul inputs,
    f32 accumulation) as the kernel."""
    h1 = _leaky_relu(jnp.dot(x.astype(jnp.bfloat16), w1,
                             preferred_element_type=jnp.float32) + b1)
    h2 = _leaky_relu(jnp.dot(h1.astype(jnp.bfloat16), w2,
                             preferred_element_type=jnp.float32) + b2)
    z = jnp.sum(h2 * w3, axis=-1, keepdims=True) + b3
    return _leaky_relu(z)


if __name__ == "__main__":
    key = jax.random.PRNGKey(0)
    key, kx = jax.random.split(key)

    batch = 8
    x = jax.random.normal(kx, (batch, 900), jnp.float32)

    w1, b1, w2, b2, w3, b3 = init_params(key)

    out = binary_classification_forward(x, w1, b1, w2, b2, w3, b3)
    out = jax.block_until_ready(out)

    ref = reference_forward(x, w1, b1, w2, b2, w3, b3)
    assert out.shape == (batch, 1), out.shape
    # Tolerance absorbs benign bf16 double-rounding / accumulation-order noise.
    assert jnp.allclose(out, ref, atol=2e-3, rtol=2e-3), "mismatch vs reference"

    print("KERNEL_OK")
</pallas_src>

<mosaic_0001>
module attributes {stable_mosaic.version = 11 : i64} {
  func.func @mlp_kernel(%arg0: i32, %arg1: memref<128x900xf32, #tpu.memory_space<vmem>>, %arg2: memref<900x200xbf16, #tpu.memory_space<vmem>>, %arg3: memref<1x200xf32, #tpu.memory_space<vmem>>, %arg4: memref<200x20xbf16, #tpu.memory_space<vmem>>, %arg5: memref<1x20xf32, #tpu.memory_space<vmem>>, %arg6: memref<1x20xf32, #tpu.memory_space<vmem>>, %arg7: memref<1x1xf32, #tpu.memory_space<smem>>, %arg8: memref<1x1x128xf32, #tpu.memory_space<vmem>>) attributes {dimension_semantics = [#tpu.dimension_semantics<parallel>], iteration_bounds = array<i64: 1>, scalar_prefetch = 0 : i64, scratch_operands = 0 : i64, tpu.core_type = #tpu.core_type<tc>, window_params = [{transform_indices = @transform_0, window_bounds = array<i64: 128, 900>}, {pipeline_mode = #tpu.pipeline_mode<synchronous>, transform_indices = @transform_1, window_bounds = array<i64: 900, 200>}, {pipeline_mode = #tpu.pipeline_mode<synchronous>, transform_indices = @transform_2, window_bounds = array<i64: 1, 200>}, {pipeline_mode = #tpu.pipeline_mode<synchronous>, transform_indices = @transform_3, window_bounds = array<i64: 200, 20>}, {pipeline_mode = #tpu.pipeline_mode<synchronous>, transform_indices = @transform_4, window_bounds = array<i64: 1, 20>}, {pipeline_mode = #tpu.pipeline_mode<synchronous>, transform_indices = @transform_5, window_bounds = array<i64: 1, 20>}, {transform_indices = @transform_6, window_bounds = array<i64: 1, 1>}, {transform_indices = @transform_7, window_bounds = array<i64: 1, 1, 128>}]} {
    %c0 = arith.constant 0 : index
    %c0_0 = arith.constant 0 : index
    %0 = vector.load %arg1[%c0, %c0_0] : memref<128x900xf32, #tpu.memory_space<vmem>>, vector<128x900xf32>
    %1 = arith.truncf %0 : vector<128x900xf32> to vector<128x900xbf16>
    %c0_1 = arith.constant 0 : index
    %c0_2 = arith.constant 0 : index
    %2 = vector.load %arg2[%c0_1, %c0_2] : memref<900x200xbf16, #tpu.memory_space<vmem>>, vector<900x200xbf16>
    %cst = arith.constant dense<0.000000e+00> : vector<128x200xf32>
    %3 = tpu.matmul %1, %2, %cst {dimension_numbers = #tpu.dot_dimension_numbers<[1], [0], [0], [1], [0, 0, 1, 1], [], []>} : vector<128x900xbf16>, vector<900x200xbf16>, vector<128x200xf32> -> vector<128x200xf32>
    %c0_3 = arith.constant 0 : index
    %c0_4 = arith.constant 0 : index
    %4 = vector.load %arg3[%c0_3, %c0_4] : memref<1x200xf32, #tpu.memory_space<vmem>>, vector<1x200xf32>
    %5 = vector.broadcast %4 : vector<1x200xf32> to vector<128x200xf32>
    %6 = arith.addf %3, %5 : vector<128x200xf32>
    %cst_5 = arith.constant 0.000000e+00 : f32
    %7 = vector.broadcast %cst_5 : f32 to vector<128x200xf32>
    %8 = arith.cmpf ogt, %6, %7 : vector<128x200xf32>
    %cst_6 = arith.constant 0.00999999977 : f32
    %9 = vector.broadcast %cst_6 : f32 to vector<128x200xf32>
    %10 = arith.mulf %9, %6 : vector<128x200xf32>
    %11 = arith.select %8, %6, %10 : vector<128x200xi1>, vector<128x200xf32>
    %12 = arith.truncf %11 : vector<128x200xf32> to vector<128x200xbf16>
    %c0_7 = arith.constant 0 : index
    %c0_8 = arith.constant 0 : index
    %13 = vector.load %arg4[%c0_7, %c0_8] : memref<200x20xbf16, #tpu.memory_space<vmem>>, vector<200x20xbf16>
    %cst_9 = arith.constant dense<0.000000e+00> : vector<128x20xf32>
    %14 = tpu.matmul %12, %13, %cst_9 {dimension_numbers = #tpu.dot_dimension_numbers<[1], [0], [0], [1], [0, 0, 1, 1], [], []>} : vector<128x200xbf16>, vector<200x20xbf16>, vector<128x20xf32> -> vector<128x20xf32>
    %c0_10 = arith.constant 0 : index
    %c0_11 = arith.constant 0 : index
    %15 = vector.load %arg5[%c0_10, %c0_11] : memref<1x20xf32, #tpu.memory_space<vmem>>, vector<1x20xf32>
    %16 = vector.broadcast %15 : vector<1x20xf32> to vector<128x20xf32>
    %17 = arith.addf %14, %16 : vector<128x20xf32>
    %cst_12 = arith.constant 0.000000e+00 : f32
    %18 = vector.broadcast %cst_12 : f32 to vector<128x20xf32>
    %19 = arith.cmpf ogt, %17, %18 : vector<128x20xf32>
    %cst_13 = arith.constant 0.00999999977 : f32
    %20 = vector.broadcast %cst_13 : f32 to vector<128x20xf32>
    %21 = arith.mulf %20, %17 : vector<128x20xf32>
    %22 = arith.select %19, %17, %21 : vector<128x20xi1>, vector<128x20xf32>
    %c0_14 = arith.constant 0 : index
    %c0_15 = arith.constant 0 : index
    %23 = vector.load %arg6[%c0_14, %c0_15] : memref<1x20xf32, #tpu.memory_space<vmem>>, vector<1x20xf32>
    %24 = vector.broadcast %23 : vector<1x20xf32> to vector<128x20xf32>
    %25 = arith.mulf %22, %24 : vector<128x20xf32>
    %cst_16 = arith.constant dense<0.000000e+00> : vector<128xf32>
    %26 = vector.multi_reduction <add>, %25, %cst_16 [1] : vector<128x20xf32> to vector<128xf32>
    %c0_17 = arith.constant 0 : index
    %c0_18 = arith.constant 0 : index
    %27 = memref.load %arg7[%c0_17, %c0_18] : memref<1x1xf32, #tpu.memory_space<smem>>
    %28 = vector.broadcast %27 : f32 to vector<128xf32>
    %29 = arith.addf %26, %28 : vector<128xf32>
    %cst_19 = arith.constant 0.000000e+00 : f32
    %30 = vector.broadcast %cst_19 : f32 to vector<128xf32>
    %31 = arith.cmpf ogt, %29, %30 : vector<128xf32>
    %cst_20 = arith.constant 0.00999999977 : f32
    %32 = vector.broadcast %cst_20 : f32 to vector<128xf32>
    %33 = arith.mulf %32, %29 : vector<128xf32>
    %34 = arith.select %31, %29, %33 : vector<128xi1>, vector<128xf32>
    %c0_21 = arith.constant 0 : index
    %c0_22 = arith.constant 0 : index
    %c0_23 = arith.constant 0 : index
    %35 = vector.load %arg8[%c0_21, %c0_22, %c0_23] : memref<1x1x128xf32, #tpu.memory_space<vmem>>, vector<1x1x128xf32>
    %36 = vector.shape_cast %35 : vector<1x1x128xf32> to vector<128xf32>
    %37 = vector.shape_cast %34 : vector<128xf32> to vector<1x1x128xf32>
    tpu.vector_store %arg8[%c0_21, %c0_22, %c0_23], %37 {strides = array<i32>} : memref<1x1x128xf32, #tpu.memory_space<vmem>>, vector<1x1x128xf32>,
    return
  }
  func.func @transform_0(%arg0: i32) -> (i32, i32) {
    %c0_i32 = arith.constant 0 : i32
    %c0_i32_0 = arith.constant 0 : i32
    return %arg0, %c0_i32 : i32, i32
  }
  func.func @transform_1(%arg0: i32) -> (i32, i32) {
    %c0_i32 = arith.constant 0 : i32
    %c0_i32_0 = arith.constant 0 : i32
    %c0_i32_1 = arith.constant 0 : i32
    return %c0_i32, %c0_i32_0 : i32, i32
  }
  func.func @transform_2(%arg0: i32) -> (i32, i32) {
    %c0_i32 = arith.constant 0 : i32
    %c0_i32_0 = arith.constant 0 : i32
    %c0_i32_1 = arith.constant 0 : i32
    return %c0_i32, %c0_i32_0 : i32, i32
  }
  func.func @transform_3(%arg0: i32) -> (i32, i32) {
    %c0_i32 = arith.constant 0 : i32
    %c0_i32_0 = arith.constant 0 : i32
    %c0_i32_1 = arith.constant 0 : i32
    return %c0_i32, %c0_i32_0 : i32, i32
  }
  func.func @transform_4(%arg0: i32) -> (i32, i32) {
    %c0_i32 = arith.constant 0 : i32
    %c0_i32_0 = arith.constant 0 : i32
    %c0_i32_1 = arith.constant 0 : i32
    return %c0_i32, %c0_i32_0 : i32, i32
  }
  func.func @transform_5(%arg0: i32) -> (i32, i32) {
    %c0_i32 = arith.constant 0 : i32
    %c0_i32_0 = arith.constant 0 : i32
    %c0_i32_1 = arith.constant 0 : i32
    return %c0_i32, %c0_i32_0 : i32, i32
  }
  func.func @transform_6(%arg0: i32) -> (i32, i32) {
    %c0_i32 = arith.constant 0 : i32
    %c0_i32_0 = arith.constant 0 : i32
    %c0_i32_1 = arith.constant 0 : i32
    return %c0_i32, %c0_i32_0 : i32, i32
  }
  func.func @transform_7(%arg0: i32) -> (i32, i32, i32) {
    %c0_i32 = arith.constant 0 : i32
    %c0_i32_0 = arith.constant 0 : i32
    %c0_i32_1 = arith.constant 0 : i32
    return %arg0, %c0_i32, %c0_i32_0 : i32, i32, i32
  }
}

</mosaic_0001>

<llo_original>
// kernel: binary_classification_forward.1
$region0: #{binary_classification_forward.1}
  #allocation0 [shape = 'u32[]', space=smem, size = 0x4, offset = 0x4, fixed_abs, tag = 'smem constant byte address 0x4 - core index']
  #allocation1 [shape = 'u32[144,128]{1,0:T(1,128)}', space=vmem, size = 0x12000, scoped, tag = 'internal scratch']
  #allocation2 [shape = 'f32[1,1]{1,0:T(1,128)S(6)}', space=smem, size = 0x200, scoped, tag = 'scoped memory for binary_classification_forward.1']
  %s0 = inlined_call_operand.vmem [shape: f32[128,900], index: 0, kind: input, shape index: {}]
  %s1 = inlined_call_operand.vmem [shape: bf16[900,200], index: 1, kind: input, shape index: {}]
  %s2 = inlined_call_operand.vmem [shape: f32[1,200], index: 2, kind: input, shape index: {}]
  %s3 = inlined_call_operand.vmem [shape: bf16[200,20], index: 3, kind: input, shape index: {}]
  %s4 = inlined_call_operand.vmem [shape: f32[1,20], index: 4, kind: input, shape index: {}]
  %s5 = inlined_call_operand.vmem [shape: f32[1,20], index: 5, kind: input, shape index: {}]
  %s6 = inlined_call_operand.<no memory space> [shape: f32[1,1], index: 6, kind: input, shape index: {}]
  %s7 = inlined_call_operand.vmem [shape: f32[1,1,128], index: 7, kind: output, shape index: {}]
  %s8 = sld [smem:[#allocation0]]
  $region38: #{binary_classification_forward.1} parent=0
    _
  %s10 = ssub.s32 1, %s8
  %s11 = scalar_select 0, %s10, %s8
  %12 = sst [smem:[#allocation2]] %s6
  // Predicated region
  $region2: #{binary_classification_forward.1} parent=0 // pred_check
    _
  $region3: #{binary_classification_forward.1} parent=0 // pred_check_branch
    %14 = sbr.rel (0) target = $region5
  $region4: #{binary_classification_forward.1} parent=0 // pred_region
    _
  $region5: #{binary_classification_forward.1} parent=0 // pred_fallthru
    _
  // Predicated region
  $region6: #{binary_classification_forward.1} parent=0 // pred_check
    _
  $region7: #{binary_classification_forward.1} parent=0 // pred_check_branch
    %16 = sbr.rel (0) target = $region9
  $region8: #{binary_classification_forward.1} parent=0 // pred_region
    _
  $region9: #{binary_classification_forward.1} parent=0 // pred_fallthru
    _
  // Predicated region
  $region10: #{binary_classification_forward.1} parent=0 // pred_check
    _
  $region11: #{binary_classification_forward.1} parent=0 // pred_check_branch
    %18 = sbr.rel (0) target = $region13
  $region12: #{binary_classification_forward.1} parent=0 // pred_region
    _
  $region13: #{binary_classification_forward.1} parent=0 // pred_fallthru
    _
  // Predicated region
  $region14: #{binary_classification_forward.1} parent=0 // pred_check
    _
  $region15: #{binary_classification_forward.1} parent=0 // pred_check_branch
    %20 = sbr.rel (0) target = $region17
  $region16: #{binary_classification_forward.1} parent=0 // pred_region
    _
  $region17: #{binary_classification_forward.1} parent=0 // pred_fallthru
    _
  // Predicated region
  $region18: #{binary_classification_forward.1} parent=0 // pred_check
    _
  $region19: #{binary_classification_forward.1} parent=0 // pred_check_branch
    %22 = sbr.rel (0) target = $region21
  $region20: #{binary_classification_forward.1} parent=0 // pred_region
    _
  $region21: #{binary_classification_forward.1} parent=0 // pred_fallthru
    _
  // Predicated region
  $region22: #{binary_classification_forward.1} parent=0 // pred_check
    _
  $region23: #{binary_classification_forward.1} parent=0 // pred_check_branch
    %24 = sbr.rel (0) target = $region25
  $region24: #{binary_classification_forward.1} parent=0 // pred_region
    _
  $region25: #{binary_classification_forward.1} parent=0 // pred_fallthru
    _
  // Predicated region
  $region26: #{binary_classification_forward.1} parent=0 // pred_check
    _
  $region27: #{binary_classification_forward.1} parent=0 // pred_check_branch
    %26 = sbr.rel (0) target = $region29
  $region28: #{binary_classification_forward.1} parent=0 // pred_region
    _
  $region29: #{binary_classification_forward.1} parent=0 // pred_fallthru
    _
  %v28 = vld [vmem:[%s0] sm:$0xff]
  %v29 = vld [vmem:[%s0 + $0x8] sm:$0xff]
  %v30 = vld [vmem:[%s0 + $0x10] sm:$0xff]
  %v31 = vld [vmem:[%s0 + $0x18] sm:$0xff]
  %v32 = vld [vmem:[%s0 + $0x20] sm:$0xff]
  %v33 = vld [vmem:[%s0 + $0x28] sm:$0xff]
  %v34 = vld [vmem:[%s0 + $0x30] sm:$0xff]
  %v35 = vld [vmem:[%s0 + $0x38] sm:$0xff]
  %v36 = vld [vmem:[%s0 + $0x40] sm:$0xff]
  %v37 = vld [vmem:[%s0 + $0x48] sm:$0xff]
  %v38 = vld [vmem:[%s0 + $0x50] sm:$0xff]
  %v39 = vld [vmem:[%s0 + $0x58] sm:$0xff]
  %v40 = vld [vmem:[%s0 + $0x60] sm:$0xff]
  %v41 = vld [vmem:[%s0 + $0x68] sm:$0xff]
  %v42 = vld [vmem:[%s0 + $0x70] sm:$0xff]
  %v43 = vld [vmem:[%s0 + $0x78] sm:$0xff]
  %v44 = vld [vmem:[%s0 + $0x80] sm:$0xff]
  %v45 = vld [vmem:[%s0 + $0x88] sm:$0xff]
  %v46 = vld [vmem:[%s0 + $0x90] sm:$0xff]
  %v47 = vld [vmem:[%s0 + $0x98] sm:$0xff]
  %v48 = vld [vmem:[%s0 + $0xa0] sm:$0xff]
  %v49 = vld [vmem:[%s0 + $0xa8] sm:$0xff]
  %v50 = vld [vmem:[%s0 + $0xb0] sm:$0xff]
  %v51 = vld [vmem:[%s0 + $0xb8] sm:$0xff]
  %v52 = vld [vmem:[%s0 + $0xc0] sm:$0xff]
  %v53 = vld [vmem:[%s0 + $0xc8] sm:$0xff]
  %v54 = vld [vmem:[%s0 + $0xd0] sm:$0xff]
  %v55 = vld [vmem:[%s0 + $0xd8] sm:$0xff]
  %v56 = vld [vmem:[%s0 + $0xe0] sm:$0xff]
  %v57 = vld [vmem:[%s0 + $0xe8] sm:$0xff]
  %v58 = vld [vmem:[%s0 + $0xf0] sm:$0xff]
  %v59 = vld [vmem:[%s0 + $0xf8] sm:$0xff]
  %v60 = vld [vmem:[%s0 + $0x100] sm:$0xff]
  %v61 = vld [vmem:[%s0 + $0x108] sm:$0xff]
  %v62 = vld [vmem:[%s0 + $0x110] sm:$0xff]
  %v63 = vld [vmem:[%s0 + $0x118] sm:$0xff]
  %v64 = vld [vmem:[%s0 + $0x120] sm:$0xff]
  %v65 = vld [vmem:[%s0 + $0x128] sm:$0xff]
  %v66 = vld [vmem:[%s0 + $0x130] sm:$0xff]
  %v67 = vld [vmem:[%s0 + $0x138] sm:$0xff]
  %v68 = vld [vmem:[%s0 + $0x140] sm:$0xff]
  %v69 = vld [vmem:[%s0 + $0x148] sm:$0xff]
  %v70 = vld [vmem:[%s0 + $0x150] sm:$0xff]
  %v71 = vld [vmem:[%s0 + $0x158] sm:$0xff]
  %v72 = vld [vmem:[%s0 + $0x160] sm:$0xff]
  %v73 = vld [vmem:[%s0 + $0x168] sm:$0xff]
  %v74 = vld [vmem:[%s0 + $0x170] sm:$0xff]
  %v75 = vld [vmem:[%s0 + $0x178] sm:$0xff]
  %v76 = vld [vmem:[%s0 + $0x180] sm:$0xff]
  %v77 = vld [vmem:[%s0 + $0x188] sm:$0xff]
  %v78 = vld [vmem:[%s0 + $0x190] sm:$0xff]
  %v79 = vld [vmem:[%s0 + $0x198] sm:$0xff]
  %v80 = vld [vmem:[%s0 + $0x1a0] sm:$0xff]
  %v81 = vld [vmem:[%s0 + $0x1a8] sm:$0xff]
  %v82 = vld [vmem:[%s0 + $0x1b0] sm:$0xff]
  %v83 = vld [vmem:[%s0 + $0x1b8] sm:$0xff]
  %v84 = vld [vmem:[%s0 + $0x1c0] sm:$0xff]
  %v85 = vld [vmem:[%s0 + $0x1c8] sm:$0xff]
  %v86 = vld [vmem:[%s0 + $0x1d0] sm:$0xff]
  %v87 = vld [vmem:[%s0 + $0x1d8] sm:$0xff]
  %v88 = vld [vmem:[%s0 + $0x1e0] sm:$0xff]
  %v89 = vld [vmem:[%s0 + $0x1e8] sm:$0xff]
  %v90 = vld [vmem:[%s0 + $0x1f0] sm:$0xff]
  %v91 = vld [vmem:[%s0 + $0x1f8] sm:$0xff]
  %v92 = vld [vmem:[%s0 + $0x200] sm:$0xff]
  %v93 = vld [vmem:[%s0 + $0x208] sm:$0xff]
  %v94 = vld [vmem:[%s0 + $0x210] sm:$0xff]
  %v95 = vld [vmem:[%s0 + $0x218] sm:$0xff]
  %v96 = vld [vmem:[%s0 + $0x220] sm:$0xff]
  %v97 = vld [vmem:[%s0 + $0x228] sm:$0xff]
  %v98 = vld [vmem:[%s0 + $0x230] sm:$0xff]
  %v99 = vld [vmem:[%s0 + $0x238] sm:$0xff]
  %v100 = vld [vmem:[%s0 + $0x240] sm:$0xff]
  %v101 = vld [vmem:[%s0 + $0x248] sm:$0xff]
  %v102 = vld [vmem:[%s0 + $0x250] sm:$0xff]
  %v103 = vld [vmem:[%s0 + $0x258] sm:$0xff]
  %v104 = vld [vmem:[%s0 + $0x260] sm:$0xff]
  %v105 = vld [vmem:[%s0 + $0x268] sm:$0xff]
  %v106 = vld [vmem:[%s0 + $0x270] sm:$0xff]
  %v107 = vld [vmem:[%s0 + $0x278] sm:$0xff]
  %v108 = vld [vmem:[%s0 + $0x280] sm:$0xff]
  %v109 = vld [vmem:[%s0 + $0x288] sm:$0xff]
  %v110 = vld [vmem:[%s0 + $0x290] sm:$0xff]
  %v111 = vld [vmem:[%s0 + $0x298] sm:$0xff]
  %v112 = vld [vmem:[%s0 + $0x2a0] sm:$0xff]
  %v113 = vld [vmem:[%s0 + $0x2a8] sm:$0xff]
  %v114 = vld [vmem:[%s0 + $0x2b0] sm:$0xff]
  %v115 = vld [vmem:[%s0 + $0x2b8] sm:$0xff]
  %v116 = vld [vmem:[%s0 + $0x2c0] sm:$0xff]
  %v117 = vld [vmem:[%s0 + $0x2c8] sm:$0xff]
  %v118 = vld [vmem:[%s0 + $0x2d0] sm:$0xff]
  %v119 = vld [vmem:[%s0 + $0x2d8] sm:$0xff]
  %v120 = vld [vmem:[%s0 + $0x2e0] sm:$0xff]
  %v121 = vld [vmem:[%s0 + $0x2e8] sm:$0xff]
  %v122 = vld [vmem:[%s0 + $0x2f0] sm:$0xff]
  %v123 = vld [vmem:[%s0 + $0x2f8] sm:$0xff]
  %v124 = vld [vmem:[%s0 + $0x300] sm:$0xff]
  %v125 = vld [vmem:[%s0 + $0x308] sm:$0xff]
  %v126 = vld [vmem:[%s0 + $0x310] sm:$0xff]
  %v127 = vld [vmem:[%s0 + $0x318] sm:$0xff]
  %v128 = vld [vmem:[%s0 + $0x320] sm:$0xff]
  %v129 = vld [vmem:[%s0 + $0x328] sm:$0xff]
  %v130 = vld [vmem:[%s0 + $0x330] sm:$0xff]
  %v131 = vld [vmem:[%s0 + $0x338] sm:$0xff]
  %v132 = vld [vmem:[%s0 + $0x340] sm:$0xff]
  %v133 = vld [vmem:[%s0 + $0x348] sm:$0xff]
  %v134 = vld [vmem:[%s0 + $0x350] sm:$0xff]
  %v135 = vld [vmem:[%s0 + $0x358] sm:$0xff]
  %v136 = vld [vmem:[%s0 + $0x360] sm:$0xff]
  %v137 = vld [vmem:[%s0 + $0x368] sm:$0xff]
  %v138 = vld [vmem:[%s0 + $0x370] sm:$0xff]
  %v139 = vld [vmem:[%s0 + $0x378] sm:$0xff]
  %v140 = vld [vmem:[%s0 + $0x380] sm:$0xff]
  %v141 = vld [vmem:[%s0 + $0x388] sm:$0xff]
  %v142 = vld [vmem:[%s0 + $0x390] sm:$0xff]
  %v143 = vld [vmem:[%s0 + $0x398] sm:$0xff]
  %v144 = vld [vmem:[%s0 + $0x3a0] sm:$0xff]
  %v145 = vld [vmem:[%s0 + $0x3a8] sm:$0xff]
  %v146 = vld [vmem:[%s0 + $0x3b0] sm:$0xff]
  %v147 = vld [vmem:[%s0 + $0x3b8] sm:$0xff]
  %v148 = vld [vmem:[%s0 + $0x3c0] sm:$0xff]
  %v149 = vld [vmem:[%s0 + $0x3c8] sm:$0xff]
  %v150 = vld [vmem:[%s0 + $0x3d0] sm:$0xff]
  %v151 = vld [vmem:[%s0 + $0x3d8] sm:$0xff]
  %v152 = vld [vmem:[%s0 + $0x3e0] sm:$0xff]
  %v153 = vld [vmem:[%s0 + $0x3e8] sm:$0xff]
  %v154 = vld [vmem:[%s0 + $0x3f0] sm:$0xff]
  %v155 = vld [vmem:[%s0 + $0x3f8] sm:$0xff]
  %v156 = vpack.c.bf16 %v36, %v28
  %v157 = vpack.c.bf16 %v37, %v29
  %v158 = vpack.c.bf16 %v38, %v30
  %v159 = vpack.c.bf16 %v39, %v31
  %v160 = vpack.c.bf16 %v40, %v32
  %v161 = vpack.c.bf16 %v41, %v33
  %v162 = vpack.c.bf16 %v42, %v34
  %v163 = vpack.c.bf16 %v43, %v35
  %v164 = vpack.c.bf16 %v52, %v44
  %v165 = vpack.c.bf16 %v53, %v45
  %v166 = vpack.c.bf16 %v54, %v46
  %v167 = vpack.c.bf16 %v55, %v47
  %v168 = vpack.c.bf16 %v56, %v48
  %v169 = vpack.c.bf16 %v57, %v49
  %v170 = vpack.c.bf16 %v58, %v50
  %v171 = vpack.c.bf16 %v59, %v51
  %v172 = vpack.c.bf16 %v68, %v60
  %v173 = vpack.c.bf16 %v69, %v61
  %v174 = vpack.c.bf16 %v70, %v62
  %v175 = vpack.c.bf16 %v71, %v63
  %v176 = vpack.c.bf16 %v72, %v64
  %v177 = vpack.c.bf16 %v73, %v65
  %v178 = vpack.c.bf16 %v74, %v66
  %v179 = vpack.c.bf16 %v75, %v67
  %v180 = vpack.c.bf16 %v84, %v76
  %v181 = vpack.c.bf16 %v85, %v77
  %v182 = vpack.c.bf16 %v86, %v78
  %v183 = vpack.c.bf16 %v87, %v79
  %v184 = vpack.c.bf16 %v88, %v80
  %v185 = vpack.c.bf16 %v89, %v81
  %v186 = vpack.c.bf16 %v90, %v82
  %v187 = vpack.c.bf16 %v91, %v83
  %v188 = vpack.c.bf16 %v100, %v92
  %v189 = vpack.c.bf16 %v101, %v93
  %v190 = vpack.c.bf16 %v102, %v94
  %v191 = vpack.c.bf16 %v103, %v95
  %v192 = vpack.c.bf16 %v104, %v96
  %v193 = vpack.c.bf16 %v105, %v97
  %v194 = vpack.c.bf16 %v106, %v98
  %v195 = vpack.c.bf16 %v107, %v99
  %v196 = vpack.c.bf16 %v116, %v108
  %v197 = vpack.c.bf16 %v117, %v109
  %v198 = vpack.c.bf16 %v118, %v110
  %v199 = vpack.c.bf16 %v119, %v111
  %v200 = vpack.c.bf16 %v120, %v112
  %v201 = vpack.c.bf16 %v121, %v113
  %v202 = vpack.c.bf16 %v122, %v114
  %v203 = vpack.c.bf16 %v123, %v115
  %v204 = vpack.c.bf16 %v132, %v124
  %v205 = vpack.c.bf16 %v133, %v125
  %v206 = vpack.c.bf16 %v134, %v126
  %v207 = vpack.c.bf16 %v135, %v127
  %v208 = vpack.c.bf16 %v136, %v128
  %v209 = vpack.c.bf16 %v137, %v129
  %v210 = vpack.c.bf16 %v138, %v130
  %v211 = vpack.c.bf16 %v139, %v131
  %v212 = vpack.c.bf16 %v148, %v140
  %v213 = vpack.c.bf16 %v149, %v141
  %v214 = vpack.c.bf16 %v150, %v142
  %v215 = vpack.c.bf16 %v151, %v143
  %v216 = vpack.c.bf16 %v152, %v144
  %v217 = vpack.c.bf16 %v153, %v145
  %v218 = vpack.c.bf16 %v154, %v146
  %v219 = vpack.c.bf16 %v155, %v147
  %v220 = vld [vmem:[%s1] sm:$0xff]
  %v221 = vld [vmem:[%s1 + $0x8] sm:$0xff]
  %v222 = vld [vmem:[%s1 + $0x10] sm:$0xff]
  %v223 = vld [vmem:[%s1 + $0x18] sm:$0xff]
  %v224 = vld [vmem:[%s1 + $0x20] sm:$0xff]
  %v225 = vld [vmem:[%s1 + $0x28] sm:$0xff]
  %v226 = vld [vmem:[%s1 + $0x30] sm:$0xff]
  %v227 = vld [vmem:[%s1 + $0x38] sm:$0xff]
  %v228 = vld [vmem:[%s1 + $0x40] sm:$0xff]
  %v229 = vld [vmem:[%s1 + $0x48] sm:$0xff]
  %v230 = vld [vmem:[%s1 + $0x50] sm:$0xff]
  %v231 = vld [vmem:[%s1 + $0x58] sm:$0xff]
  %v232 = vld [vmem:[%s1 + $0x60] sm:$0xff]
  %v233 = vld [vmem:[%s1 + $0x68] sm:$0xff]
  %v234 = vld [vmem:[%s1 + $0x70] sm:$0xff]
  %v235 = vld [vmem:[%s1 + $0x78] sm:$0xff]
  %v236 = vld [vmem:[%s1 + $0x80] sm:$0xff]
  %v237 = vld [vmem:[%s1 + $0x88] sm:$0xff]
  %v238 = vld [vmem:[%s1 + $0x90] sm:$0xff]
  %v239 = vld [vmem:[%s1 + $0x98] sm:$0xff]
  %v240 = vld [vmem:[%s1 + $0xa0] sm:$0xff]
  %v241 = vld [vmem:[%s1 + $0xa8] sm:$0xff]
  %v242 = vld [vmem:[%s1 + $0xb0] sm:$0xff]
  %v243 = vld [vmem:[%s1 + $0xb8] sm:$0xff]
  %v244 = vld [vmem:[%s1 + $0xc0] sm:$0xff]
  %v245 = vld [vmem:[%s1 + $0xc8] sm:$0xff]
  %v246 = vld [vmem:[%s1 + $0xd0] sm:$0xff]
  %v247 = vld [vmem:[%s1 + $0xd8] sm:$0xff]
  %v248 = vld [vmem:[%s1 + $0xe0] sm:$0xff]
  %v249 = vld [vmem:[%s1 + $0xe8] sm:$0xff]
  %v250 = vld [vmem:[%s1 + $0xf0] sm:$0xff]
  %v251 = vld [vmem:[%s1 + $0xf8] sm:$0xff]
  %v252 = vld [vmem:[%s1 + $0x100] sm:$0xff]
  %v253 = vld [vmem:[%s1 + $0x108] sm:$0xff]
  %v254 = vld [vmem:[%s1 + $0x110] sm:$0xff]
  %v255 = vld [vmem:[%s1 + $0x118] sm:$0xff]
  %v256 = vld [vmem:[%s1 + $0x120] sm:$0xff]
  %v257 = vld [vmem:[%s1 + $0x128] sm:$0xff]
  %v258 = vld [vmem:[%s1 + $0x130] sm:$0xff]
  %v259 = vld [vmem:[%s1 + $0x138] sm:$0xff]
  %v260 = vld [vmem:[%s1 + $0x140] sm:$0xff]
  %v261 = vld [vmem:[%s1 + $0x148] sm:$0xff]
  %v262 = vld [vmem:[%s1 + $0x150] sm:$0xff]
  %v263 = vld [vmem:[%s1 + $0x158] sm:$0xff]
  %v264 = vld [vmem:[%s1 + $0x160] sm:$0xff]
  %v265 = vld [vmem:[%s1 + $0x168] sm:$0xff]
  %v266 = vld [vmem:[%s1 + $0x170] sm:$0xff]
  %v267 = vld [vmem:[%s1 + $0x178] sm:$0xff]
  %v268 = vld [vmem:[%s1 + $0x180] sm:$0xff]
  %v269 = vld [vmem:[%s1 + $0x188] sm:$0xff]
  %v270 = vld [vmem:[%s1 + $0x190] sm:$0xff]
  %v271 = vld [vmem:[%s1 + $0x198] sm:$0xff]
  %v272 = vld [vmem:[%s1 + $0x1a0] sm:$0xff]
  %v273 = vld [vmem:[%s1 + $0x1a8] sm:$0xff]
  %v274 = vld [vmem:[%s1 + $0x1b0] sm:$0xff]
  %v275 = vld [vmem:[%s1 + $0x1b8] sm:$0xff]
  %v276 = vld [vmem:[%s1 + $0x1c0] sm:$0xff]
  %v277 = vld [vmem:[%s1 + $0x1c8] sm:$0xff]
  %v278 = vld [vmem:[%s1 + $0x1d0] sm:$0xff]
  %v279 = vld [vmem:[%s1 + $0x1d8] sm:$0xff]
  %v280 = vld [vmem:[%s1 + $0x1e0] sm:$0xff]
  %v281 = vld [vmem:[%s1 + $0x1e8] sm:$0xff]
  %v282 = vld [vmem:[%s1 + $0x1f0] sm:$0xff]
  %v283 = vld [vmem:[%s1 + $0x1f8] sm:$0xff]
  %v284 = vld [vmem:[%s1 + $0x200] sm:$0xff]
  %v285 = vld [vmem:[%s1 + $0x208] sm:$0xff]
  %v286 = vld [vmem:[%s1 + $0x210] sm:$0xff]
  %v287 = vld [vmem:[%s1 + $0x218] sm:$0xff]
  %v288 = vld [vmem:[%s1 + $0x220] sm:$0xff]
  %v289 = vld [vmem:[%s1 + $0x228] sm:$0xff]
  %v290 = vld [vmem:[%s1 + $0x230] sm:$0xff]
  %v291 = vld [vmem:[%s1 + $0x238] sm:$0xff]
  %v292 = vld [vmem:[%s1 + $0x240] sm:$0xff]
  %v293 = vld [vmem:[%s1 + $0x248] sm:$0xff]
  %v294 = vld [vmem:[%s1 + $0x250] sm:$0xff]
  %v295 = vld [vmem:[%s1 + $0x258] sm:$0xff]
  %v296 = vld [vmem:[%s1 + $0x260] sm:$0xff]
  %v297 = vld [vmem:[%s1 + $0x268] sm:$0xff]
  %v298 = vld [vmem:[%s1 + $0x270] sm:$0xff]
  %v299 = vld [vmem:[%s1 + $0x278] sm:$0xff]
  %v300 = vld [vmem:[%s1 + $0x280] sm:$0xff]
  %v301 = vld [vmem:[%s1 + $0x288] sm:$0xff]
  %v302 = vld [vmem:[%s1 + $0x290] sm:$0xff]
  %v303 = vld [vmem:[%s1 + $0x298] sm:$0xff]
  %v304 = vld [vmem:[%s1 + $0x2a0] sm:$0xff]
  %v305 = vld [vmem:[%s1 + $0x2a8] sm:$0xff]
  %v306 = vld [vmem:[%s1 + $0x2b0] sm:$0xff]
  %v307 = vld [vmem:[%s1 + $0x2b8] sm:$0xff]
  %v308 = vld [vmem:[%s1 + $0x2c0] sm:$0xff]
  %v309 = vld [vmem:[%s1 + $0x2c8] sm:$0xff]
  %v310 = vld [vmem:[%s1 + $0x2d0] sm:$0xff]
  %v311 = vld [vmem:[%s1 + $0x2d8] sm:$0xff]
  %v312 = vld [vmem:[%s1 + $0x2e0] sm:$0xff]
  %v313 = vld [vmem:[%s1 + $0x2e8] sm:$0xff]
  %v314 = vld [vmem:[%s1 + $0x2f0] sm:$0xff]
  %v315 = vld [vmem:[%s1 + $0x2f8] sm:$0xff]
  %v316 = vld [vmem:[%s1 + $0x300] sm:$0xff]
  %v317 = vld [vmem:[%s1 + $0x308] sm:$0xff]
  %v318 = vld [vmem:[%s1 + $0x310] sm:$0xff]
  %v319 = vld [vmem:[%s1 + $0x318] sm:$0xff]
  %v320 = vld [vmem:[%s1 + $0x320] sm:$0xff]
  %v321 = vld [vmem:[%s1 + $0x328] sm:$0xff]
  %v322 = vld [vmem:[%s1 + $0x330] sm:$0xff]
  %v323 = vld [vmem:[%s1 + $0x338] sm:$0xff]
  %v324 = vld [vmem:[%s1 + $0x340] sm:$0xff]
  %v325 = vld [vmem:[%s1 + $0x348] sm:$0xff]
  %v326 = vld [vmem:[%s1 + $0x350] sm:$0xff]
  %v327 = vld [vmem:[%s1 + $0x358] sm:$0xff]
  %v328 = vld [vmem:[%s1 + $0x360] sm:$0xff]
  %v329 = vld [vmem:[%s1 + $0x368] sm:$0xff]
  %v330 = vld [vmem:[%s1 + $0x370] sm:$0xff]
  %v331 = vld [vmem:[%s1 + $0x378] sm:$0xff]
  %v332 = vld [vmem:[%s1 + $0x380] sm:$0x33]
  %v333 = vld [vmem:[%s2] sm:$0x3]
  %v335 = vlaneseq
  %v336 = vshrl.u32 %v335, 7
  %v337 = vsub.s32 0, %v336
  %v338 = vrot.slane %v333, %v337
  %v339 = vlaneseq
  %v340 = vshrl.u32 %v339, 7
  %v341 = vsub.s32 1, %v340
  %v342 = vrot.slane %v333, %v341
  %v458 = vunpack.c.l.b16 %v220
  %v459 = vunpack.c.h.b16 %v220
  %v460 = vunpack.c.l.b16 %v221
  %v461 = vunpack.c.h.b16 %v221
  %v462 = vunpack.c.l.b16 %v222
  %v463 = vunpack.c.h.b16 %v222
  %v464 = vunpack.c.l.b16 %v223
  %v465 = vunpack.c.h.b16 %v223
  %v466 = vunpack.c.l.b16 %v224
  %v467 = vunpack.c.h.b16 %v224
  %v468 = vunpack.c.l.b16 %v225
  %v469 = vunpack.c.h.b16 %v225
  %v470 = vunpack.c.l.b16 %v226
  %v471 = vunpack.c.h.b16 %v226
  %v472 = vunpack.c.l.b16 %v227
  %v473 = vunpack.c.h.b16 %v227
  %v474 = vunpack.c.l.b16 %v228
  %v475 = vunpack.c.h.b16 %v228
  %v476 = vunpack.c.l.b16 %v229
  %v477 = vunpack.c.h.b16 %v229
  %v478 = vunpack.c.l.b16 %v230
  %v479 = vunpack.c.h.b16 %v230
  %v480 = vunpack.c.l.b16 %v231
  %v481 = vunpack.c.h.b16 %v231
  %v482 = vunpack.c.l.b16 %v232
  %v483 = vunpack.c.h.b16 %v232
  %v484 = vunpack.c.l.b16 %v233
  %v485 = vunpack.c.h.b16 %v233
  %v486 = vunpack.c.l.b16 %v234
  %v487 = vunpack.c.h.b16 %v234
  %v488 = vunpack.c.l.b16 %v235
  %v489 = vunpack.c.h.b16 %v235
  %v490 = vunpack.c.l.b16 %v236
  %v491 = vunpack.c.h.b16 %v236
  %v492 = vunpack.c.l.b16 %v237
  %v493 = vunpack.c.h.b16 %v237
  %v494 = vunpack.c.l.b16 %v238
  %v495 = vunpack.c.h.b16 %v238
  %v496 = vunpack.c.l.b16 %v239
  %v497 = vunpack.c.h.b16 %v239
  %v498 = vunpack.c.l.b16 %v240
  %v499 = vunpack.c.h.b16 %v240
  %v500 = vunpack.c.l.b16 %v241
  %v501 = vunpack.c.h.b16 %v241
  %v502 = vunpack.c.l.b16 %v242
  %v503 = vunpack.c.h.b16 %v242
  %v504 = vunpack.c.l.b16 %v243
  %v505 = vunpack.c.h.b16 %v243
  %v506 = vunpack.c.l.b16 %v244
  %v507 = vunpack.c.h.b16 %v244
  %v508 = vunpack.c.l.b16 %v245
  %v509 = vunpack.c.h.b16 %v245
  %v510 = vunpack.c.l.b16 %v246
  %v511 = vunpack.c.h.b16 %v246
  %v512 = vunpack.c.l.b16 %v247
  %v513 = vunpack.c.h.b16 %v247
  %v514 = vunpack.c.l.b16 %v248
  %v515 = vunpack.c.h.b16 %v248
  %v516 = vunpack.c.l.b16 %v249
  %v517 = vunpack.c.h.b16 %v249
  %v518 = vunpack.c.l.b16 %v250
  %v519 = vunpack.c.h.b16 %v250
  %v520 = vunpack.c.l.b16 %v251
  %v521 = vunpack.c.h.b16 %v251
  %v522 = vunpack.c.l.b16 %v252
  %v523 = vunpack.c.h.b16 %v252
  %v524 = vunpack.c.l.b16 %v253
  %v525 = vunpack.c.h.b16 %v253
  %v526 = vunpack.c.l.b16 %v254
  %v527 = vunpack.c.h.b16 %v254
  %v528 = vunpack.c.l.b16 %v255
  %v529 = vunpack.c.h.b16 %v255
  %v530 = vunpack.c.l.b16 %v256
  %v531 = vunpack.c.h.b16 %v256
  %v532 = vunpack.c.l.b16 %v257
  %v533 = vunpack.c.h.b16 %v257
  %v534 = vunpack.c.l.b16 %v258
  %v535 = vunpack.c.h.b16 %v258
  %v536 = vunpack.c.l.b16 %v259
  %v537 = vunpack.c.h.b16 %v259
  %v538 = vunpack.c.l.b16 %v260
  %v539 = vunpack.c.h.b16 %v260
  %v540 = vunpack.c.l.b16 %v261
  %v541 = vunpack.c.h.b16 %v261
  %v542 = vunpack.c.l.b16 %v262
  %v543 = vunpack.c.h.b16 %v262
  %v544 = vunpack.c.l.b16 %v263
  %v545 = vunpack.c.h.b16 %v263
  %v546 = vunpack.c.l.b16 %v264
  %v547 = vunpack.c.h.b16 %v264
  %v548 = vunpack.c.l.b16 %v265
  %v549 = vunpack.c.h.b16 %v265
  %v550 = vunpack.c.l.b16 %v266
  %v551 = vunpack.c.h.b16 %v266
  %v552 = vunpack.c.l.b16 %v267
  %v553 = vunpack.c.h.b16 %v267
  %v554 = vunpack.c.l.b16 %v268
  %v555 = vunpack.c.h.b16 %v268
  %v556 = vunpack.c.l.b16 %v269
  %v557 = vunpack.c.h.b16 %v269
  %v558 = vunpack.c.l.b16 %v270
  %v559 = vunpack.c.h.b16 %v270
  %v560 = vunpack.c.l.b16 %v271
  %v561 = vunpack.c.h.b16 %v271
  %v562 = vunpack.c.l.b16 %v272
  %v563 = vunpack.c.h.b16 %v272
  %v564 = vunpack.c.l.b16 %v273
  %v565 = vunpack.c.h.b16 %v273
  %v566 = vunpack.c.l.b16 %v274
  %v567 = vunpack.c.h.b16 %v274
  %v568 = vunpack.c.l.b16 %v275
  %v569 = vunpack.c.h.b16 %v275
  %v570 = vunpack.c.l.b16 %v276
  %v571 = vunpack.c.h.b16 %v276
  %v572 = vunpack.c.l.b16 %v277
  %v573 = vunpack.c.h.b16 %v277
  %v574 = vunpack.c.l.b16 %v278
  %v575 = vunpack.c.h.b16 %v278
  %v576 = vunpack.c.l.b16 %v279
  %v577 = vunpack.c.h.b16 %v279
  %v578 = vunpack.c.l.b16 %v280
  %v579 = vunpack.c.h.b16 %v280
  %v580 = vunpack.c.l.b16 %v281
  %v581 = vunpack.c.h.b16 %v281
  %v582 = vunpack.c.l.b16 %v282
  %v583 = vunpack.c.h.b16 %v282
  %v584 = vunpack.c.l.b16 %v283
  %v585 = vunpack.c.h.b16 %v283
  %v586 = vunpack.c.l.b16 %v284
  %v587 = vunpack.c.h.b16 %v284
  %v588 = vunpack.c.l.b16 %v285
  %v589 = vunpack.c.h.b16 %v285
  %v590 = vunpack.c.l.b16 %v286
  %v591 = vunpack.c.h.b16 %v286
  %v592 = vunpack.c.l.b16 %v287
  %v593 = vunpack.c.h.b16 %v287
  %v594 = vunpack.c.l.b16 %v288
  %v595 = vunpack.c.h.b16 %v288
  %v596 = vunpack.c.l.b16 %v289
  %v597 = vunpack.c.h.b16 %v289
  %v598 = vunpack.c.l.b16 %v290
  %v599 = vunpack.c.h.b16 %v290
  %v600 = vunpack.c.l.b16 %v291
  %v601 = vunpack.c.h.b16 %v291
  %v602 = vunpack.c.l.b16 %v292
  %v603 = vunpack.c.h.b16 %v292
  %v604 = vunpack.c.l.b16 %v293
  %v605 = vunpack.c.h.b16 %v293
  %v606 = vunpack.c.l.b16 %v294
  %v607 = vunpack.c.h.b16 %v294
  %v608 = vunpack.c.l.b16 %v295
  %v609 = vunpack.c.h.b16 %v295
  %v610 = vunpack.c.l.b16 %v296
  %v611 = vunpack.c.h.b16 %v296
  %v612 = vunpack.c.l.b16 %v297
  %v613 = vunpack.c.h.b16 %v297
  %v614 = vunpack.c.l.b16 %v298
  %v615 = vunpack.c.h.b16 %v298
  %v616 = vunpack.c.l.b16 %v299
  %v617 = vunpack.c.h.b16 %v299
  %v618 = vunpack.c.l.b16 %v300
  %v619 = vunpack.c.h.b16 %v300
  %v620 = vunpack.c.l.b16 %v301
  %v621 = vunpack.c.h.b16 %v301
  %v622 = vunpack.c.l.b16 %v302
  %v623 = vunpack.c.h.b16 %v302
  %v624 = vunpack.c.l.b16 %v303
  %v625 = vunpack.c.h.b16 %v303
  %v626 = vunpack.c.l.b16 %v304
  %v627 = vunpack.c.h.b16 %v304
  %v628 = vunpack.c.l.b16 %v305
  %v629 = vunpack.c.h.b16 %v305
  %v630 = vunpack.c.l.b16 %v306
  %v631 = vunpack.c.h.b16 %v306
  %v632 = vunpack.c.l.b16 %v307
  %v633 = vunpack.c.h.b16 %v307
  %v634 = vunpack.c.l.b16 %v308
  %v635 = vunpack.c.h.b16 %v308
  %v636 = vunpack.c.l.b16 %v309
  %v637 = vunpack.c.h.b16 %v309
  %v638 = vunpack.c.l.b16 %v310
  %v639 = vunpack.c.h.b16 %v310
  %v640 = vunpack.c.l.b16 %v311
  %v641 = vunpack.c.h.b16 %v311
  %v642 = vunpack.c.l.b16 %v312
  %v643 = vunpack.c.h.b16 %v312
  %v644 = vunpack.c.l.b16 %v313
  %v645 = vunpack.c.h.b16 %v313
  %v646 = vunpack.c.l.b16 %v314
  %v647 = vunpack.c.h.b16 %v314
  %v648 = vunpack.c.l.b16 %v315
  %v649 = vunpack.c.h.b16 %v315
  %v650 = vunpack.c.l.b16 %v316
  %v651 = vunpack.c.h.b16 %v316
  %v652 = vunpack.c.l.b16 %v317
  %v653 = vunpack.c.h.b16 %v317
  %v654 = vunpack.c.l.b16 %v318
  %v655 = vunpack.c.h.b16 %v318
  %v656 = vunpack.c.l.b16 %v319
  %v657 = vunpack.c.h.b16 %v319
  %v658 = vunpack.c.l.b16 %v320
  %v659 = vunpack.c.h.b16 %v320
  %v660 = vunpack.c.l.b16 %v321
  %v661 = vunpack.c.h.b16 %v321
  %v662 = vunpack.c.l.b16 %v322
  %v663 = vunpack.c.h.b16 %v322
  %v664 = vunpack.c.l.b16 %v323
  %v665 = vunpack.c.h.b16 %v323
  %v666 = vunpack.c.l.b16 %v324
  %v667 = vunpack.c.h.b16 %v324
  %v668 = vunpack.c.l.b16 %v325
  %v669 = vunpack.c.h.b16 %v325
  %v670 = vunpack.c.l.b16 %v326
  %v671 = vunpack.c.h.b16 %v326
  %v672 = vunpack.c.l.b16 %v327
  %v673 = vunpack.c.h.b16 %v327
  %v674 = vunpack.c.l.b16 %v328
  %v675 = vunpack.c.h.b16 %v328
  %v676 = vunpack.c.l.b16 %v329
  %v677 = vunpack.c.h.b16 %v329
  %v678 = vunpack.c.l.b16 %v330
  %v679 = vunpack.c.h.b16 %v330
  %v680 = vunpack.c.l.b16 %v331
  %v681 = vunpack.c.h.b16 %v331
  %v682 = vunpack.c.l.b16 %v332
  %v683 = vunpack.c.h.b16 %v332
  %v684 = vpack.c.b16 %v460, %v458
  %v685 = vpack.c.b16 %v461, %v459
  %v686 = vpack.c.b16 %v464, %v462
  %v687 = vpack.c.b16 %v465, %v463
  %v688 = vpack.c.b16 %v468, %v466
  %v689 = vpack.c.b16 %v469, %v467
  %v690 = vpack.c.b16 %v472, %v470
  %v691 = vpack.c.b16 %v473, %v471
  %v692 = vpack.c.b16 %v476, %v474
  %v693 = vpack.c.b16 %v477, %v475
  %v694 = vpack.c.b16 %v480, %v478
  %v695 = vpack.c.b16 %v481, %v479
  %v696 = vpack.c.b16 %v484, %v482
  %v697 = vpack.c.b16 %v485, %v483
  %v698 = vpack.c.b16 %v488, %v486
  %v699 = vpack.c.b16 %v489, %v487
  %v700 = vpack.c.b16 %v492, %v490
  %v701 = vpack.c.b16 %v493, %v491
  %v702 = vpack.c.b16 %v496, %v494
  %v703 = vpack.c.b16 %v497, %v495
  %v704 = vpack.c.b16 %v500, %v498
  %v705 = vpack.c.b16 %v501, %v499
  %v706 = vpack.c.b16 %v504, %v502
  %v707 = vpack.c.b16 %v505, %v503
  %v708 = vpack.c.b16 %v508, %v506
  %v709 = vpack.c.b16 %v509, %v507
  %v710 = vpack.c.b16 %v512, %v510
  %v711 = vpack.c.b16 %v513, %v511
  %v712 = vpack.c.b16 %v516, %v514
  %v713 = vpack.c.b16 %v517, %v515
  %v714 = vpack.c.b16 %v520, %v518
  %v715 = vpack.c.b16 %v521, %v519
  %v716 = vpack.c.b16 %v524, %v522
  %v717 = vpack.c.b16 %v525, %v523
  %v718 = vpack.c.b16 %v528, %v526
  %v719 = vpack.c.b16 %v529, %v527
  %v720 = vpack.c.b16 %v532, %v530
  %v721 = vpack.c.b16 %v533, %v531
  %v722 = vpack.c.b16 %v536, %v534
  %v723 = vpack.c.b16 %v537, %v535
  %v724 = vpack.c.b16 %v540, %v538
  %v725 = vpack.c.b16 %v541, %v539
  %v726 = vpack.c.b16 %v544, %v542
  %v727 = vpack.c.b16 %v545, %v543
  %v728 = vpack.c.b16 %v548, %v546
  %v729 = vpack.c.b16 %v549, %v547
  %v730 = vpack.c.b16 %v552, %v550
  %v731 = vpack.c.b16 %v553, %v551
  %v732 = vpack.c.b16 %v556, %v554
  %v733 = vpack.c.b16 %v557, %v555
  %v734 = vpack.c.b16 %v560, %v558
  %v735 = vpack.c.b16 %v561, %v559
  %v736 = vpack.c.b16 %v564, %v562
  %v737 = vpack.c.b16 %v565, %v563
  %v738 = vpack.c.b16 %v568, %v566
  %v739 = vpack.c.b16 %v569, %v567
  %v740 = vpack.c.b16 %v572, %v570
  %v741 = vpack.c.b16 %v573, %v571
  %v742 = vpack.c.b16 %v576, %v574
  %v743 = vpack.c.b16 %v577, %v575
  %v744 = vpack.c.b16 %v580, %v578
  %v745 = vpack.c.b16 %v581, %v579
  %v746 = vpack.c.b16 %v584, %v582
  %v747 = vpack.c.b16 %v585, %v583
  %v748 = vpack.c.b16 %v588, %v586
  %v749 = vpack.c.b16 %v589, %v587
  %v750 = vpack.c.b16 %v592, %v590
  %v751 = vpack.c.b16 %v593, %v591
  %v752 = vpack.c.b16 %v596, %v594
  %v753 = vpack.c.b16 %v597, %v595
  %v754 = vpack.c.b16 %v600, %v598
  %v755 = vpack.c.b16 %v601, %v599
  %v756 = vpack.c.b16 %v604, %v602
  %v757 = vpack.c.b16 %v605, %v603
  %v758 = vpack.c.b16 %v608, %v606
  %v759 = vpack.c.b16 %v609, %v607
  %v760 = vpack.c.b16 %v612, %v610
  %v761 = vpack.c.b16 %v613, %v611
  %v762 = vpack.c.b16 %v616, %v614
  %v763 = vpack.c.b16 %v617, %v615
  %v764 = vpack.c.b16 %v620, %v618
  %v765 = vpack.c.b16 %v621, %v619
  %v766 = vpack.c.b16 %v624, %v622
  %v767 = vpack.c.b16 %v625, %v623
  %v768 = vpack.c.b16 %v628, %v626
  %v769 = vpack.c.b16 %v629, %v627
  %v770 = vpack.c.b16 %v632, %v630
  %v771 = vpack.c.b16 %v633, %v631
  %v772 = vpack.c.b16 %v636, %v634
  %v773 = vpack.c.b16 %v637, %v635
  %v774 = vpack.c.b16 %v640, %v638
  %v775 = vpack.c.b16 %v641, %v639
  %v776 = vpack.c.b16 %v644, %v642
  %v777 = vpack.c.b16 %v645, %v643
  %v778 = vpack.c.b16 %v648, %v646
  %v779 = vpack.c.b16 %v649, %v647
  %v780 = vpack.c.b16 %v652, %v650
  %v781 = vpack.c.b16 %v653, %v651
  %v782 = vpack.c.b16 %v656, %v654
  %v783 = vpack.c.b16 %v657, %v655
  %v784 = vpack.c.b16 %v660, %v658
  %v785 = vpack.c.b16 %v661, %v659
  %v786 = vpack.c.b16 %v664, %v662
  %v787 = vpack.c.b16 %v665, %v663
  %v788 = vpack.c.b16 %v668, %v666
  %v789 = vpack.c.b16 %v669, %v667
  %v790 = vpack.c.b16 %v672, %v670
  %v791 = vpack.c.b16 %v673, %v671
  %v792 = vpack.c.b16 %v676, %v674
  %v793 = vpack.c.b16 %v677, %v675
  %v794 = vpack.c.b16 %v680, %v678
  %v795 = vpack.c.b16 %v681, %v679
  %v796 = vpack.c.b16 %v682, %v682
  %v797 = vpack.c.b16 %v683, %v683
  %vm910 = vcmask 31744
  %v912 = vsel %vm910, %v163, 0
  %v915 = vsel %vm910, %v171, 0
  %v918 = vsel %vm910, %v179, 0
  %v921 = vsel %vm910, %v187, 0
  %v924 = vsel %vm910, %v195, 0
  %v927 = vsel %vm910, %v203, 0
  %v930 = vsel %vm910, %v211, 0
  %v933 = vsel %vm910, %v219, 0
  %vm935 = vcmask 1041408
  %v937 = vsel %vm935, %v796, 0
  %v940 = vsel %vm935, %v797, 0
  %942 = vmatprep.subr.bf16.mxu0 %v699
  %943 = vmatpush1.bf16.msra.mxu0 %v698
  %944 = vmatprep.subr.bf16.mxu0 %v697
  %945 = vmatpush1.bf16.msra.mxu0 %v696
  %946 = vmatprep.subr.bf16.mxu0 %v695
  %947 = vmatpush1.bf16.msra.mxu0 %v694
  %948 = vmatprep.subr.bf16.mxu0 %v693
  %949 = vmatpush1.bf16.msra.mxu0 %v692
  %950 = vmatprep.subr.bf16.mxu0 %v691
  %951 = vmatpush1.bf16.msra.mxu0 %v690
  %952 = vmatprep.subr.bf16.mxu0 %v689
  %953 = vmatpush1.bf16.msra.mxu0 %v688
  %954 = vmatprep.subr.bf16.mxu0 %v687
  %955 = vmatpush1.bf16.msra.mxu0 %v686
  %956 = vmatprep.subr.bf16.mxu0 %v685
  %957 = vmatpush1.bf16.msra.mxu0 %v684
  %958 = vmatprep.subr.bf16.mxu0 %v715
  %959 = vmatpush2.bf16.msra.mxu0 %v714
  %960 = vmatprep.subr.bf16.mxu0 %v713
  %961 = vmatpush2.bf16.msra.mxu0 %v712
  %962 = vmatprep.subr.bf16.mxu0 %v711
  %963 = vmatpush2.bf16.msra.mxu0 %v710
  %964 = vmatprep.subr.bf16.mxu0 %v709
  %965 = vmatpush2.bf16.msra.mxu0 %v708
  %966 = vmatprep.subr.bf16.mxu0 %v707
  %967 = vmatpush2.bf16.msra.mxu0 %v706
  %968 = vmatprep.subr.bf16.mxu0 %v705
  %969 = vmatpush2.bf16.msra.mxu0 %v704
  %970 = vmatprep.subr.bf16.mxu0 %v703
  %971 = vmatpush2.bf16.msra.mxu0 %v702
  %972 = vmatprep.subr.bf16.mxu0 %v701
  %973 = vmatpush2.bf16.msra.mxu0 %v700
  %974 = vmatprep.mubr.bf16.mxu0 %v157
  %975 = vmatmul.mubr.bf16.gmra.mxu0 %v156
  %v976 = vpop.f32.mrf.mxu0
  %v977 = vadd.f32 %v338, %v976
  %v978 = vpop.f32.mrf.mxu0
  %v979 = vadd.f32 %v342, %v978
  %v980 = vpop.f32.mrf.mxu0
  %v981 = vadd.f32 %v338, %v980
  %v982 = vpop.f32.mrf.mxu0
  %v983 = vadd.f32 %v342, %v982
  %984 = vmatprep.mubr.bf16.mxu0 %v165
  %985 = vmatmul.mubr.bf16.gmra.mxu0 %v164
  %v986 = vpop.f32.mrf.mxu0
  %v987 = vadd.f32 %v338, %v986
  %v988 = vpop.f32.mrf.mxu0
  %v989 = vadd.f32 %v342, %v988
  %v990 = vpop.f32.mrf.mxu0
  %v991 = vadd.f32 %v338, %v990
  %v992 = vpop.f32.mrf.mxu0
  %v993 = vadd.f32 %v342, %v992
  %994 = vmatprep.mubr.bf16.mxu0 %v173
  %995 = vmatmul.mubr.bf16.gmra.mxu0 %v172
  %v996 = vpop.f32.mrf.mxu0
  %v997 = vadd.f32 %v338, %v996
  %v998 = vpop.f32.mrf.mxu0
  %v999 = vadd.f32 %v342, %v998
  %v1000 = vpop.f32.mrf.mxu0
  %v1001 = vadd.f32 %v338, %v1000
  %v1002 = vpop.f32.mrf.mxu0
  %v1003 = vadd.f32 %v342, %v1002
  %1004 = vmatprep.mubr.bf16.mxu0 %v181
  %1005 = vmatmul.mubr.bf16.gmra.mxu0 %v180
  %v1006 = vpop.f32.mrf.mxu0
  %v1007 = vadd.f32 %v338, %v1006
  %v1008 = vpop.f32.mrf.mxu0
  %v1009 = vadd.f32 %v342, %v1008
  %v1010 = vpop.f32.mrf.mxu0
  %v1011 = vadd.f32 %v338, %v1010
  %v1012 = vpop.f32.mrf.mxu0
  %v1013 = vadd.f32 %v342, %v1012
  %1014 = vmatprep.mubr.bf16.mxu0 %v189
  %1015 = vmatmul.mubr.bf16.gmra.mxu0 %v188
  %v1016 = vpop.f32.mrf.mxu0
  %v1017 = vadd.f32 %v338, %v1016
  %v1018 = vpop.f32.mrf.mxu0
  %v1019 = vadd.f32 %v342, %v1018
  %v1020 = vpop.f32.mrf.mxu0
  %v1021 = vadd.f32 %v338, %v1020
  %v1022 = vpop.f32.mrf.mxu0
  %v1023 = vadd.f32 %v342, %v1022
  %1024 = vmatprep.mubr.bf16.mxu0 %v197
  %1025 = vmatmul.mubr.bf16.gmra.mxu0 %v196
  %v1026 = vpop.f32.mrf.mxu0
  %v1027 = vadd.f32 %v338, %v1026
  %v1028 = vpop.f32.mrf.mxu0
  %v1029 = vadd.f32 %v342, %v1028
  %v1030 = vpop.f32.mrf.mxu0
  %v1031 = vadd.f32 %v338, %v1030
  %v1032 = vpop.f32.mrf.mxu0
  %v1033 = vadd.f32 %v342, %v1032
  %1034 = vmatprep.mubr.bf16.mxu0 %v205
  %1035 = vmatmul.mubr.bf16.gmra.mxu0 %v204
  %v1036 = vpop.f32.mrf.mxu0
  %v1037 = vadd.f32 %v338, %v1036
  %v1038 = vpop.f32.mrf.mxu0
  %v1039 = vadd.f32 %v342, %v1038
  %v1040 = vpop.f32.mrf.mxu0
  %v1041 = vadd.f32 %v338, %v1040
  %v1042 = vpop.f32.mrf.mxu0
  %v1043 = vadd.f32 %v342, %v1042
  %1044 = vmatprep.mubr.bf16.mxu0 %v213
  %1045 = vmatmul.mubr.bf16.gmra.mxu0 %v212
  %v1046 = vpop.f32.mrf.mxu0
  %v1047 = vadd.f32 %v338, %v1046
  %v1048 = vpop.f32.mrf.mxu0
  %v1049 = vadd.f32 %v342, %v1048
  %v1050 = vpop.f32.mrf.mxu0
  %v1051 = vadd.f32 %v338, %v1050
  %v1052 = vpop.f32.mrf.mxu0
  %v1053 = vadd.f32 %v342, %v1052
  %1054 = vdwg.mxu0
  %1055 = vmatprep.subr.bf16.mxu0 %v731
  %1056 = vmatpush1.bf16.msra.mxu0 %v730
  %1057 = vmatprep.subr.bf16.mxu0 %v729
  %1058 = vmatpush1.bf16.msra.mxu0 %v728
  %1059 = vmatprep.subr.bf16.mxu0 %v727
  %1060 = vmatpush1.bf16.msra.mxu0 %v726
  %1061 = vmatprep.subr.bf16.mxu0 %v725
  %1062 = vmatpush1.bf16.msra.mxu0 %v724
  %1063 = vmatprep.subr.bf16.mxu0 %v723
  %1064 = vmatpush1.bf16.msra.mxu0 %v722
  %1065 = vmatprep.subr.bf16.mxu0 %v721
  %1066 = vmatpush1.bf16.msra.mxu0 %v720
  %1067 = vmatprep.subr.bf16.mxu0 %v719
  %1068 = vmatpush1.bf16.msra.mxu0 %v718
  %1069 = vmatprep.subr.bf16.mxu0 %v717
  %1070 = vmatpush1.bf16.msra.mxu0 %v716
  %1071 = vmatprep.subr.bf16.mxu0 %v747
  %1072 = vmatpush2.bf16.msra.mxu0 %v746
  %1073 = vmatprep.subr.bf16.mxu0 %v745
  %1074 = vmatpush2.bf16.msra.mxu0 %v744
  %1075 = vmatprep.subr.bf16.mxu0 %v743
  %1076 = vmatpush2.bf16.msra.mxu0 %v742
  %1077 = vmatprep.subr.bf16.mxu0 %v741
  %1078 = vmatpush2.bf16.msra.mxu0 %v740
  %1079 = vmatprep.subr.bf16.mxu0 %v739
  %1080 = vmatpush2.bf16.msra.mxu0 %v738
  %1081 = vmatprep.subr.bf16.mxu0 %v737
  %1082 = vmatpush2.bf16.msra.mxu0 %v736
  %1083 = vmatprep.subr.bf16.mxu0 %v735
  %1084 = vmatpush2.bf16.msra.mxu0 %v734
  %1085 = vmatprep.subr.bf16.mxu0 %v733
  %1086 = vmatpush2.bf16.msra.mxu0 %v732
  %1087 = vmatprep.mubr.bf16.mxu0 %v159
  %1088 = vmatmul.mubr.bf16.gmra.mxu0 %v158
  %v1089 = vpop.f32.mrf.mxu0
  %v1090 = vadd.f32 %v977, %v1089
  %v1091 = vpop.f32.mrf.mxu0
  %v1092 = vadd.f32 %v979, %v1091
  %v1093 = vpop.f32.mrf.mxu0
  %v1094 = vadd.f32 %v981, %v1093
  %v1095 = vpop.f32.mrf.mxu0
  %v1096 = vadd.f32 %v983, %v1095
  %1097 = vmatprep.mubr.bf16.mxu0 %v167
  %1098 = vmatmul.mubr.bf16.gmra.mxu0 %v166
  %v1099 = vpop.f32.mrf.mxu0
  %v1100 = vadd.f32 %v987, %v1099
  %v1101 = vpop.f32.mrf.mxu0
  %v1102 = vadd.f32 %v989, %v1101
  %v1103 = vpop.f32.mrf.mxu0
  %v1104 = vadd.f32 %v991, %v1103
  %v1105 = vpop.f32.mrf.mxu0
  %v1106 = vadd.f32 %v993, %v1105
  %1107 = vmatprep.mubr.bf16.mxu0 %v175
  %1108 = vmatmul.mubr.bf16.gmra.mxu0 %v174
  %v1109 = vpop.f32.mrf.mxu0
  %v1110 = vadd.f32 %v997, %v1109
  %v1111 = vpop.f32.mrf.mxu0
  %v1112 = vadd.f32 %v999, %v1111
  %v1113 = vpop.f32.mrf.mxu0
  %v1114 = vadd.f32 %v1001, %v1113
  %v1115 = vpop.f32.mrf.mxu0
  %v1116 = vadd.f32 %v1003, %v1115
  %1117 = vmatprep.mubr.bf16.mxu0 %v183
  %1118 = vmatmul.mubr.bf16.gmra.mxu0 %v182
  %v1119 = vpop.f32.mrf.mxu0
  %v1120 = vadd.f32 %v1007, %v1119
  %v1121 = vpop.f32.mrf.mxu0
  %v1122 = vadd.f32 %v1009, %v1121
  %v1123 = vpop.f32.mrf.mxu0
  %v1124 = vadd.f32 %v1011, %v1123
  %v1125 = vpop.f32.mrf.mxu0
  %v1126 = vadd.f32 %v1013, %v1125
  %1127 = vmatprep.mubr.bf16.mxu0 %v191
  %1128 = vmatmul.mubr.bf16.gmra.mxu0 %v190
  %v1129 = vpop.f32.mrf.mxu0
  %v1130 = vadd.f32 %v1017, %v1129
  %v1131 = vpop.f32.mrf.mxu0
  %v1132 = vadd.f32 %v1019, %v1131
  %v1133 = vpop.f32.mrf.mxu0
  %v1134 = vadd.f32 %v1021, %v1133
  %v1135 = vpop.f32.mrf.mxu0
  %v1136 = vadd.f32 %v1023, %v1135
  %1137 = vmatprep.mubr.bf16.mxu0 %v199
  %1138 = vmatmul.mubr.bf16.gmra.mxu0 %v198
  %v1139 = vpop.f32.mrf.mxu0
  %v1140 = vadd.f32 %v1027, %v1139
  %v1141 = vpop.f32.mrf.mxu0
  %v1142 = vadd.f32 %v1029, %v1141
  %v1143 = vpop.f32.mrf.mxu0
  %v1144 = vadd.f32 %v1031, %v1143
  %v1145 = vpop.f32.mrf.mxu0
  %v1146 = vadd.f32 %v1033, %v1145
  %1147 = vmatprep.mubr.bf16.mxu0 %v207
  %1148 = vmatmul.mubr.bf16.gmra.mxu0 %v206
  %v1149 = vpop.f32.mrf.mxu0
  %v1150 = vadd.f32 %v1037, %v1149
  %v1151 = vpop.f32.mrf.mxu0
  %v1152 = vadd.f32 %v1039, %v1151
  %v1153 = vpop.f32.mrf.mxu0
  %v1154 = vadd.f32 %v1041, %v1153
  %v1155 = vpop.f32.mrf.mxu0
  %v1156 = vadd.f32 %v1043, %v1155
  %1157 = vmatprep.mubr.bf16.mxu0 %v215
  %1158 = vmatmul.mubr.bf16.gmra.mxu0 %v214
  %v1159 = vpop.f32.mrf.mxu0
  %v1160 = vadd.f32 %v1047, %v1159
  %v1161 = vpop.f32.mrf.mxu0
  %v1162 = vadd.f32 %v1049, %v1161
  %v1163 = vpop.f32.mrf.mxu0
  %v1164 = vadd.f32 %v1051, %v1163
  %v1165 = vpop.f32.mrf.mxu0
  %v1166 = vadd.f32 %v1053, %v1165
  %1167 = vdwg.mxu0
  %1168 = vmatprep.subr.bf16.mxu0 %v763
  %1169 = vmatpush1.bf16.msra.mxu0 %v762
  %1170 = vmatprep.subr.bf16.mxu0 %v761
  %1171 = vmatpush1.bf16.msra.mxu0 %v760
  %1172 = vmatprep.subr.bf16.mxu0 %v759
  %1173 = vmatpush1.bf16.msra.mxu0 %v758
  %1174 = vmatprep.subr.bf16.mxu0 %v757
  %1175 = vmatpush1.bf16.msra.mxu0 %v756
  %1176 = vmatprep.subr.bf16.mxu0 %v755
  %1177 = vmatpush1.bf16.msra.mxu0 %v754
  %1178 = vmatprep.subr.bf16.mxu0 %v753
  %1179 = vmatpush1.bf16.msra.mxu0 %v752
  %1180 = vmatprep.subr.bf16.mxu0 %v751
  %1181 = vmatpush1.bf16.msra.mxu0 %v750
  %1182 = vmatprep.subr.bf16.mxu0 %v749
  %1183 = vmatpush1.bf16.msra.mxu0 %v748
  %1184 = vmatprep.subr.bf16.mxu0 %v779
  %1185 = vmatpush2.bf16.msra.mxu0 %v778
  %1186 = vmatprep.subr.bf16.mxu0 %v777
  %1187 = vmatpush2.bf16.msra.mxu0 %v776
  %1188 = vmatprep.subr.bf16.mxu0 %v775
  %1189 = vmatpush2.bf16.msra.mxu0 %v774
  %1190 = vmatprep.subr.bf16.mxu0 %v773
  %1191 = vmatpush2.bf16.msra.mxu0 %v772
  %1192 = vmatprep.subr.bf16.mxu0 %v771
  %1193 = vmatpush2.bf16.msra.mxu0 %v770
  %1194 = vmatprep.subr.bf16.mxu0 %v769
  %1195 = vmatpush2.bf16.msra.mxu0 %v768
  %1196 = vmatprep.subr.bf16.mxu0 %v767
  %1197 = vmatpush2.bf16.msra.mxu0 %v766
  %1198 = vmatprep.subr.bf16.mxu0 %v765
  %1199 = vmatpush2.bf16.msra.mxu0 %v764
  %1200 = vmatprep.mubr.bf16.mxu0 %v161
  %1201 = vmatmul.mubr.bf16.gmra.mxu0 %v160
  %v1202 = vpop.f32.mrf.mxu0
  %v1203 = vadd.f32 %v1090, %v1202
  %v1204 = vpop.f32.mrf.mxu0
  %v1205 = vadd.f32 %v1092, %v1204
  %v1206 = vpop.f32.mrf.mxu0
  %v1207 = vadd.f32 %v1094, %v1206
  %v1208 = vpop.f32.mrf.mxu0
  %v1209 = vadd.f32 %v1096, %v1208
  %1210 = vmatprep.mubr.bf16.mxu0 %v169
  %1211 = vmatmul.mubr.bf16.gmra.mxu0 %v168
  %v1212 = vpop.f32.mrf.mxu0
  %v1213 = vadd.f32 %v1100, %v1212
  %v1214 = vpop.f32.mrf.mxu0
  %v1215 = vadd.f32 %v1102, %v1214
  %v1216 = vpop.f32.mrf.mxu0
  %v1217 = vadd.f32 %v1104, %v1216
  %v1218 = vpop.f32.mrf.mxu0
  %v1219 = vadd.f32 %v1106, %v1218
  %1220 = vmatprep.mubr.bf16.mxu0 %v177
  %1221 = vmatmul.mubr.bf16.gmra.mxu0 %v176
  %v1222 = vpop.f32.mrf.mxu0
  %v1223 = vadd.f32 %v1110, %v1222
  %v1224 = vpop.f32.mrf.mxu0
  %v1225 = vadd.f32 %v1112, %v1224
  %v1226 = vpop.f32.mrf.mxu0
  %v1227 = vadd.f32 %v1114, %v1226
  %v1228 = vpop.f32.mrf.mxu0
  %v1229 = vadd.f32 %v1116, %v1228
  %1230 = vmatprep.mubr.bf16.mxu0 %v185
  %1231 = vmatmul.mubr.bf16.gmra.mxu0 %v184
  %v1232 = vpop.f32.mrf.mxu0
  %v1233 = vadd.f32 %v1120, %v1232
  %v1234 = vpop.f32.mrf.mxu0
  %v1235 = vadd.f32 %v1122, %v1234
  %v1236 = vpop.f32.mrf.mxu0
  %v1237 = vadd.f32 %v1124, %v1236
  %v1238 = vpop.f32.mrf.mxu0
  %v1239 = vadd.f32 %v1126, %v1238
  %1240 = vmatprep.mubr.bf16.mxu0 %v193
  %1241 = vmatmul.mubr.bf16.gmra.mxu0 %v192
  %v1242 = vpop.f32.mrf.mxu0
  %v1243 = vadd.f32 %v1130, %v1242
  %v1244 = vpop.f32.mrf.mxu0
  %v1245 = vadd.f32 %v1132, %v1244
  %v1246 = vpop.f32.mrf.mxu0
  %v1247 = vadd.f32 %v1134, %v1246
  %v1248 = vpop.f32.mrf.mxu0
  %v1249 = vadd.f32 %v1136, %v1248
  %1250 = vmatprep.mubr.bf16.mxu0 %v201
  %1251 = vmatmul.mubr.bf16.gmra.mxu0 %v200
  %v1252 = vpop.f32.mrf.mxu0
  %v1253 = vadd.f32 %v1140, %v1252
  %v1254 = vpop.f32.mrf.mxu0
  %v1255 = vadd.f32 %v1142, %v1254
  %v1256 = vpop.f32.mrf.mxu0
  %v1257 = vadd.f32 %v1144, %v1256
  %v1258 = vpop.f32.mrf.mxu0
  %v1259 = vadd.f32 %v1146, %v1258
  %1260 = vmatprep.mubr.bf16.mxu0 %v209
  %1261 = vmatmul.mubr.bf16.gmra.mxu0 %v208
  %v1262 = vpop.f32.mrf.mxu0
  %v1263 = vadd.f32 %v1150, %v1262
  %v1264 = vpop.f32.mrf.mxu0
  %v1265 = vadd.f32 %v1152, %v1264
  %v1266 = vpop.f32.mrf.mxu0
  %v1267 = vadd.f32 %v1154, %v1266
  %v1268 = vpop.f32.mrf.mxu0
  %v1269 = vadd.f32 %v1156, %v1268
  %1270 = vmatprep.mubr.bf16.mxu0 %v217
  %1271 = vmatmul.mubr.bf16.gmra.mxu0 %v216
  %v1272 = vpop.f32.mrf.mxu0
  %v1273 = vadd.f32 %v1160, %v1272
  %v1274 = vpop.f32.mrf.mxu0
  %v1275 = vadd.f32 %v1162, %v1274
  %v1276 = vpop.f32.mrf.mxu0
  %v1277 = vadd.f32 %v1164, %v1276
  %v1278 = vpop.f32.mrf.mxu0
  %v1279 = vadd.f32 %v1166, %v1278
  %1280 = vdwg.mxu0
  %1281 = vmatprep.subr.bf16.mxu0 %v795
  %1282 = vmatpush1.bf16.msra.mxu0 %v794
  %1283 = vmatprep.subr.bf16.mxu0 %v793
  %1284 = vmatpush1.bf16.msra.mxu0 %v792
  %1285 = vmatprep.subr.bf16.mxu0 %v791
  %1286 = vmatpush1.bf16.msra.mxu0 %v790
  %1287 = vmatprep.subr.bf16.mxu0 %v789
  %1288 = vmatpush1.bf16.msra.mxu0 %v788
  %1289 = vmatprep.subr.bf16.mxu0 %v787
  %1290 = vmatpush1.bf16.msra.mxu0 %v786
  %1291 = vmatprep.subr.bf16.mxu0 %v785
  %1292 = vmatpush1.bf16.msra.mxu0 %v784
  %1293 = vmatprep.subr.bf16.mxu0 %v783
  %1294 = vmatpush1.bf16.msra.mxu0 %v782
  %1295 = vmatprep.subr.bf16.mxu0 %v781
  %1296 = vmatpush1.bf16.msra.mxu0 %v780
  %1297 = vmatprep.subr.bf16.mxu0 0
  %1298 = vmatpush2.bf16.msra.mxu0 0
  %1299 = vmatprep.subr.bf16.mxu0 0
  %1300 = vmatpush2.bf16.msra.mxu0 0
  %1301 = vmatprep.subr.bf16.mxu0 0
  %1302 = vmatpush2.bf16.msra.mxu0 0
  %1303 = vmatprep.subr.bf16.mxu0 0
  %1304 = vmatpush2.bf16.msra.mxu0 0
  %1305 = vmatprep.subr.bf16.mxu0 0
  %1306 = vmatpush2.bf16.msra.mxu0 0
  %1307 = vmatprep.subr.bf16.mxu0 0
  %1308 = vmatpush2.bf16.msra.mxu0 0
  %1309 = vmatprep.subr.bf16.mxu0 0
  %1310 = vmatpush2.bf16.msra.mxu0 0
  %1311 = vmatprep.subr.bf16.mxu0 %v940
  %1312 = vmatpush2.bf16.msra.mxu0 %v937
  %1313 = vmatprep.mubr.bf16.mxu0 %v912
  %1314 = vmatmul.mubr.bf16.gmra.mxu0 %v162
  %v1315 = vpop.f32.mrf.mxu0
  %v1316 = vadd.f32 %v1203, %v1315
  %v1317 = vpop.f32.mrf.mxu0
  %v1318 = vadd.f32 %v1205, %v1317
  %v1319 = vpop.f32.mrf.mxu0
  %v1320 = vadd.f32 %v1207, %v1319
  %v1321 = vpop.f32.mrf.mxu0
  %v1322 = vadd.f32 %v1209, %v1321
  %1323 = vmatprep.mubr.bf16.mxu0 %v915
  %1324 = vmatmul.mubr.bf16.gmra.mxu0 %v170
  %v1325 = vpop.f32.mrf.mxu0
  %v1326 = vadd.f32 %v1213, %v1325
  %v1327 = vpop.f32.mrf.mxu0
  %v1328 = vadd.f32 %v1215, %v1327
  %v1329 = vpop.f32.mrf.mxu0
  %v1330 = vadd.f32 %v1217, %v1329
  %v1331 = vpop.f32.mrf.mxu0
  %v1332 = vadd.f32 %v1219, %v1331
  %1333 = vmatprep.mubr.bf16.mxu0 %v918
  %1334 = vmatmul.mubr.bf16.gmra.mxu0 %v178
  %v1335 = vpop.f32.mrf.mxu0
  %v1336 = vadd.f32 %v1223, %v1335
  %v1337 = vpop.f32.mrf.mxu0
  %v1338 = vadd.f32 %v1225, %v1337
  %v1339 = vpop.f32.mrf.mxu0
  %v1340 = vadd.f32 %v1227, %v1339
  %v1341 = vpop.f32.mrf.mxu0
  %v1342 = vadd.f32 %v1229, %v1341
  %1343 = vmatprep.mubr.bf16.mxu0 %v921
  %1344 = vmatmul.mubr.bf16.gmra.mxu0 %v186
  %v1345 = vpop.f32.mrf.mxu0
  %v1346 = vadd.f32 %v1233, %v1345
  %v1347 = vpop.f32.mrf.mxu0
  %v1348 = vadd.f32 %v1235, %v1347
  %v1349 = vpop.f32.mrf.mxu0
  %v1350 = vadd.f32 %v1237, %v1349
  %v1351 = vpop.f32.mrf.mxu0
  %v1352 = vadd.f32 %v1239, %v1351
  %1353 = vmatprep.mubr.bf16.mxu0 %v924
  %1354 = vmatmul.mubr.bf16.gmra.mxu0 %v194
  %v1355 = vpop.f32.mrf.mxu0
  %v1356 = vadd.f32 %v1243, %v1355
  %v1357 = vpop.f32.mrf.mxu0
  %v1358 = vadd.f32 %v1245, %v1357
  %v1359 = vpop.f32.mrf.mxu0
  %v1360 = vadd.f32 %v1247, %v1359
  %v1361 = vpop.f32.mrf.mxu0
  %v1362 = vadd.f32 %v1249, %v1361
  %1363 = vmatprep.mubr.bf16.mxu0 %v927
  %1364 = vmatmul.mubr.bf16.gmra.mxu0 %v202
  %v1365 = vpop.f32.mrf.mxu0
  %v1366 = vadd.f32 %v1253, %v1365
  %v1367 = vpop.f32.mrf.mxu0
  %v1368 = vadd.f32 %v1255, %v1367
  %v1369 = vpop.f32.mrf.mxu0
  %v1370 = vadd.f32 %v1257, %v1369
  %v1371 = vpop.f32.mrf.mxu0
  %v1372 = vadd.f32 %v1259, %v1371
  %1373 = vmatprep.mubr.bf16.mxu0 %v930
  %1374 = vmatmul.mubr.bf16.gmra.mxu0 %v210
  %v1375 = vpop.f32.mrf.mxu0
  %v1376 = vadd.f32 %v1263, %v1375
  %v1377 = vpop.f32.mrf.mxu0
  %v1378 = vadd.f32 %v1265, %v1377
  %v1379 = vpop.f32.mrf.mxu0
  %v1380 = vadd.f32 %v1267, %v1379
  %v1381 = vpop.f32.mrf.mxu0
  %v1382 = vadd.f32 %v1269, %v1381
  %1383 = vmatprep.mubr.bf16.mxu0 %v933
  %1384 = vmatmul.mubr.bf16.gmra.mxu0 %v218
  %v1385 = vpop.f32.mrf.mxu0
  %v1386 = vadd.f32 %v1273, %v1385
  %v1387 = vpop.f32.mrf.mxu0
  %v1388 = vadd.f32 %v1275, %v1387
  %v1389 = vpop.f32.mrf.mxu0
  %v1390 = vadd.f32 %v1277, %v1389
  %v1391 = vpop.f32.mrf.mxu0
  %v1392 = vadd.f32 %v1279, %v1391
  %1393 = vdwg.mxu0
  %vm1394 = vcmp.gt.f32.partialorder %v1316, 0.0
  %vm1395 = vcmp.gt.f32.partialorder %v1318, 0.0
  %vm1396 = vcmp.gt.f32.partialorder %v1320, 0.0
  %vm1397 = vcmp.gt.f32.partialorder %v1322, 0.0
  %vm1398 = vcmp.gt.f32.partialorder %v1326, 0.0
  %vm1399 = vcmp.gt.f32.partialorder %v1328, 0.0
  %vm1400 = vcmp.gt.f32.partialorder %v1330, 0.0
  %vm1401 = vcmp.gt.f32.partialorder %v1332, 0.0
  %vm1402 = vcmp.gt.f32.partialorder %v1336, 0.0
  %vm1403 = vcmp.gt.f32.partialorder %v1338, 0.0
  %vm1404 = vcmp.gt.f32.partialorder %v1340, 0.0
  %vm1405 = vcmp.gt.f32.partialorder %v1342, 0.0
  %vm1406 = vcmp.gt.f32.partialorder %v1346, 0.0
  %vm1407 = vcmp.gt.f32.partialorder %v1348, 0.0
  %vm1408 = vcmp.gt.f32.partialorder %v1350, 0.0
  %vm1409 = vcmp.gt.f32.partialorder %v1352, 0.0
  %vm1410 = vcmp.gt.f32.partialorder %v1356, 0.0
  %vm1411 = vcmp.gt.f32.partialorder %v1358, 0.0
  %vm1412 = vcmp.gt.f32.partialorder %v1360, 0.0
  %vm1413 = vcmp.gt.f32.partialorder %v1362, 0.0
  %vm1414 = vcmp.gt.f32.partialorder %v1366, 0.0
  %vm1415 = vcmp.gt.f32.partialorder %v1368, 0.0
  %vm1416 = vcmp.gt.f32.partialorder %v1370, 0.0
  %vm1417 = vcmp.gt.f32.partialorder %v1372, 0.0
  %vm1418 = vcmp.gt.f32.partialorder %v1376, 0.0
  %vm1419 = vcmp.gt.f32.partialorder %v1378, 0.0
  %vm1420 = vcmp.gt.f32.partialorder %v1380, 0.0
  %vm1421 = vcmp.gt.f32.partialorder %v1382, 0.0
  %vm1422 = vcmp.gt.f32.partialorder %v1386, 0.0
  %vm1423 = vcmp.gt.f32.partialorder %v1388, 0.0
  %vm1424 = vcmp.gt.f32.partialorder %v1390, 0.0
  %vm1425 = vcmp.gt.f32.partialorder %v1392, 0.0
  %v1426 = vmul.f32 %v1316, 0.01
  %v1427 = vmul.f32 %v1318, 0.01
  %v1428 = vmul.f32 %v1320, 0.01
  %v1429 = vmul.f32 %v1322, 0.01
  %v1430 = vmul.f32 %v1326, 0.01
  %v1431 = vmul.f32 %v1328, 0.01
  %v1432 = vmul.f32 %v1330, 0.01
  %v1433 = vmul.f32 %v1332, 0.01
  %v1434 = vmul.f32 %v1336, 0.01
  %v1435 = vmul.f32 %v1338, 0.01
  %v1436 = vmul.f32 %v1340, 0.01
  %v1437 = vmul.f32 %v1342, 0.01
  %v1438 = vmul.f32 %v1346, 0.01
  %v1439 = vmul.f32 %v1348, 0.01
  %v1440 = vmul.f32 %v1350, 0.01
  %v1441 = vmul.f32 %v1352, 0.01
  %v1442 = vmul.f32 %v1356, 0.01
  %v1443 = vmul.f32 %v1358, 0.01
  %v1444 = vmul.f32 %v1360, 0.01
  %v1445 = vmul.f32 %v1362, 0.01
  %v1446 = vmul.f32 %v1366, 0.01
  %v1447 = vmul.f32 %v1368, 0.01
  %v1448 = vmul.f32 %v1370, 0.01
  %v1449 = vmul.f32 %v1372, 0.01
  %v1450 = vmul.f32 %v1376, 0.01
  %v1451 = vmul.f32 %v1378, 0.01
  %v1452 = vmul.f32 %v1380, 0.01
  %v1453 = vmul.f32 %v1382, 0.01
  %v1454 = vmul.f32 %v1386, 0.01
  %v1455 = vmul.f32 %v1388, 0.01
  %v1456 = vmul.f32 %v1390, 0.01
  %v1457 = vmul.f32 %v1392, 0.01
  %v1458 = vsel %vm1394, %v1316, %v1426
  %v1459 = vsel %vm1395, %v1318, %v1427
  %v1460 = vsel %vm1396, %v1320, %v1428
  %v1461 = vsel %vm1397, %v1322, %v1429
  %v1462 = vsel %vm1398, %v1326, %v1430
  %v1463 = vsel %vm1399, %v1328, %v1431
  %v1464 = vsel %vm1400, %v1330, %v1432
  %v1465 = vsel %vm1401, %v1332, %v1433
  %v1466 = vsel %vm1402, %v1336, %v1434
  %v1467 = vsel %vm1403, %v1338, %v1435
  %v1468 = vsel %vm1404, %v1340, %v1436
  %v1469 = vsel %vm1405, %v1342, %v1437
  %v1470 = vsel %vm1406, %v1346, %v1438
  %v1471 = vsel %vm1407, %v1348, %v1439
  %v1472 = vsel %vm1408, %v1350, %v1440
  %v1473 = vsel %vm1409, %v1352, %v1441
  %v1474 = vsel %vm1410, %v1356, %v1442
  %v1475 = vsel %vm1411, %v1358, %v1443
  %v1476 = vsel %vm1412, %v1360, %v1444
  %v1477 = vsel %vm1413, %v1362, %v1445
  %v1478 = vsel %vm1414, %v1366, %v1446
  %v1479 = vsel %vm1415, %v1368, %v1447
  %v1480 = vsel %vm1416, %v1370, %v1448
  %v1481 = vsel %vm1417, %v1372, %v1449
  %v1482 = vsel %vm1418, %v1376, %v1450
  %v1483 = vsel %vm1419, %v1378, %v1451
  %v1484 = vsel %vm1420, %v1380, %v1452
  %v1485 = vsel %vm1421, %v1382, %v1453
  %v1486 = vsel %vm1422, %v1386, %v1454
  %v1487 = vsel %vm1423, %v1388, %v1455
  %v1488 = vsel %vm1424, %v1390, %v1456
  %v1489 = vsel %vm1425, %v1392, %v1457
  %v1490 = vpack.c.bf16 %v1460, %v1458
  %v1491 = vpack.c.bf16 %v1461, %v1459
  %v1492 = vpack.c.bf16 %v1464, %v1462
  %v1493 = vpack.c.bf16 %v1465, %v1463
  %v1494 = vpack.c.bf16 %v1468, %v1466
  %v1495 = vpack.c.bf16 %v1469, %v1467
  %v1496 = vpack.c.bf16 %v1472, %v1470
  %v1497 = vpack.c.bf16 %v1473, %v1471
  %v1498 = vpack.c.bf16 %v1476, %v1474
  %v1499 = vpack.c.bf16 %v1477, %v1475
  %v1500 = vpack.c.bf16 %v1480, %v1478
  %v1501 = vpack.c.bf16 %v1481, %v1479
  %v1502 = vpack.c.bf16 %v1484, %v1482
  %v1503 = vpack.c.bf16 %v1485, %v1483
  %v1504 = vpack.c.bf16 %v1488, %v1486
  %v1505 = vpack.c.bf16 %v1489, %v1487
  %v1506 = vld [vmem:[%s3] sm:$0xf]
  %v1507 = vld [vmem:[%s3 + $0x4] sm:$0xf]
  %v1508 = vld [vmem:[%s3 + $0x8] sm:$0xf]
  %v1509 = vld [vmem:[%s3 + $0xc] sm:$0xf]
  %v1510 = vld [vmem:[%s3 + $0x10] sm:$0xf]
  %v1511 = vld [vmem:[%s3 + $0x14] sm:$0xf]
  %v1512 = vld [vmem:[%s3 + $0x18] sm:$0xf]
  %v1513 = vld [vmem:[%s3 + $0x1c] sm:$0xf]
  %v1514 = vld [vmem:[%s3 + $0x20] sm:$0xf]
  %v1515 = vld [vmem:[%s3 + $0x24] sm:$0xf]
  %v1516 = vld [vmem:[%s3 + $0x28] sm:$0xf]
  %v1517 = vld [vmem:[%s3 + $0x2c] sm:$0xf]
  %v1518 = vld [vmem:[%s3 + $0x30] sm:$0xf]
  %v1519 = vld [vmem:[%s3 + $0x34] sm:$0xf]
  %v1520 = vld [vmem:[%s3 + $0x38] sm:$0xf]
  %v1521 = vld [vmem:[%s3 + $0x3c] sm:$0xf]
  %v1522 = vld [vmem:[%s3 + $0x40] sm:$0xf]
  %v1523 = vld [vmem:[%s3 + $0x44] sm:$0xf]
  %v1524 = vld [vmem:[%s3 + $0x48] sm:$0xf]
  %v1525 = vld [vmem:[%s3 + $0x4c] sm:$0xf]
  %v1526 = vld [vmem:[%s3 + $0x50] sm:$0xf]
  %v1527 = vld [vmem:[%s3 + $0x54] sm:$0xf]
  %v1528 = vld [vmem:[%s3 + $0x58] sm:$0xf]
  %v1529 = vld [vmem:[%s3 + $0x5c] sm:$0xf]
  %v1530 = vld [vmem:[%s3 + $0x60] sm:$0xf]
  %v1531 = vld [vmem:[%s4] sm:$0x1]
  %v1533 = vlaneseq
  %v1534 = vshrl.u32 %v1533, 7
  %v1535 = vsub.s32 0, %v1534
  %v1536 = vrot.slane %v1531, %v1535
  %v1563 = vunpack.c.l.b16 %v1506
  %v1564 = vunpack.c.l.b16 %v1507
  %v1565 = vunpack.c.l.b16 %v1508
  %v1566 = vunpack.c.l.b16 %v1509
  %v1567 = vunpack.c.l.b16 %v1510
  %v1568 = vunpack.c.l.b16 %v1511
  %v1569 = vunpack.c.l.b16 %v1512
  %v1570 = vunpack.c.l.b16 %v1513
  %v1571 = vunpack.c.l.b16 %v1514
  %v1572 = vunpack.c.l.b16 %v1515
  %v1573 = vunpack.c.l.b16 %v1516
  %v1574 = vunpack.c.l.b16 %v1517
  %v1575 = vunpack.c.l.b16 %v1518
  %v1576 = vunpack.c.l.b16 %v1519
  %v1577 = vunpack.c.l.b16 %v1520
  %v1578 = vunpack.c.l.b16 %v1521
  %v1579 = vunpack.c.l.b16 %v1522
  %v1580 = vunpack.c.l.b16 %v1523
  %v1581 = vunpack.c.l.b16 %v1524
  %v1582 = vunpack.c.l.b16 %v1525
  %v1583 = vunpack.c.l.b16 %v1526
  %v1584 = vunpack.c.l.b16 %v1527
  %v1585 = vunpack.c.l.b16 %v1528
  %v1586 = vunpack.c.l.b16 %v1529
  %v1587 = vunpack.c.l.b16 %v1530
  %v1588 = vpack.c.b16 %v1564, %v1563
  %v1589 = vpack.c.b16 %v1566, %v1565
  %v1590 = vpack.c.b16 %v1568, %v1567
  %v1591 = vpack.c.b16 %v1570, %v1569
  %v1592 = vpack.c.b16 %v1572, %v1571
  %v1593 = vpack.c.b16 %v1574, %v1573
  %v1594 = vpack.c.b16 %v1576, %v1575
  %v1595 = vpack.c.b16 %v1578, %v1577
  %v1596 = vpack.c.b16 %v1580, %v1579
  %v1597 = vpack.c.b16 %v1582, %v1581
  %v1598 = vpack.c.b16 %v1584, %v1583
  %v1599 = vpack.c.b16 %v1586, %v1585
  %v1600 = vpack.c.b16 %v1587, %v1587
  %vm1613 = vcmask 588800
  %v1615 = vsel %vm1613, %v1491, 0
  %v1618 = vsel %vm1613, %v1493, 0
  %v1621 = vsel %vm1613, %v1495, 0
  %v1624 = vsel %vm1613, %v1497, 0
  %v1627 = vsel %vm1613, %v1499, 0
  %v1630 = vsel %vm1613, %v1501, 0
  %v1633 = vsel %vm1613, %v1503, 0
  %v1636 = vsel %vm1613, %v1505, 0
  %vm1638 = vcmask 1043456
  %v1640 = vsel %vm1638, %v1600, 0
  %1642 = vmatprep.subr.bf16.mxu0 0
  %1643 = vmatpush1.bf16.msra.mxu0 %v1595
  %1644 = vmatprep.subr.bf16.mxu0 0
  %1645 = vmatpush1.bf16.msra.mxu0 %v1594
  %1646 = vmatprep.subr.bf16.mxu0 0
  %1647 = vmatpush1.bf16.msra.mxu0 %v1593
  %1648 = vmatprep.subr.bf16.mxu0 0
  %1649 = vmatpush1.bf16.msra.mxu0 %v1592
  %1650 = vmatprep.subr.bf16.mxu0 0
  %1651 = vmatpush1.bf16.msra.mxu0 %v1591
  %1652 = vmatprep.subr.bf16.mxu0 0
  %1653 = vmatpush1.bf16.msra.mxu0 %v1590
  %1654 = vmatprep.subr.bf16.mxu0 0
  %1655 = vmatpush1.bf16.msra.mxu0 %v1589
  %1656 = vmatprep.subr.bf16.mxu0 0
  %1657 = vmatpush1.bf16.msra.mxu0 %v1588
  %1658 = vmatprep.subr.bf16.mxu0 0
  %1659 = vmatpush2.bf16.msra.mxu0 0
  %1660 = vmatprep.subr.bf16.mxu0 0
  %1661 = vmatpush2.bf16.msra.mxu0 0
  %1662 = vmatprep.subr.bf16.mxu0 0
  %1663 = vmatpush2.bf16.msra.mxu0 0
  %1664 = vmatprep.subr.bf16.mxu0 0
  %1665 = vmatpush2.bf16.msra.mxu0 %v1640
  %1666 = vmatprep.subr.bf16.mxu0 0
  %1667 = vmatpush2.bf16.msra.mxu0 %v1599
  %1668 = vmatprep.subr.bf16.mxu0 0
  %1669 = vmatpush2.bf16.msra.mxu0 %v1598
  %1670 = vmatprep.subr.bf16.mxu0 0
  %1671 = vmatpush2.bf16.msra.mxu0 %v1597
  %1672 = vmatprep.subr.bf16.mxu0 0
  %1673 = vmatpush2.bf16.msra.mxu0 %v1596
  %1674 = vmatprep.mubr.bf16.mxu0 %v1615
  %1675 = vmatmul.mubr.bf16.gmra.mxu0 %v1490
  %v1676 = vpop.f32.mrf.mxu0
  %v1677 = vadd.f32 %v1536, %v1676
  %v1678 = vpop.f32.mrf.mxu0
  %v1679 = vpop.f32.mrf.mxu0
  %v1680 = vadd.f32 %v1536, %v1679
  %v1681 = vpop.f32.mrf.mxu0
  %1682 = vmatprep.mubr.bf16.mxu0 %v1618
  %1683 = vmatmul.mubr.bf16.gmra.mxu0 %v1492
  %v1684 = vpop.f32.mrf.mxu0
  %v1685 = vadd.f32 %v1536, %v1684
  %v1686 = vpop.f32.mrf.mxu0
  %v1687 = vpop.f32.mrf.mxu0
  %v1688 = vadd.f32 %v1536, %v1687
  %v1689 = vpop.f32.mrf.mxu0
  %1690 = vmatprep.mubr.bf16.mxu0 %v1621
  %1691 = vmatmul.mubr.bf16.gmra.mxu0 %v1494
  %v1692 = vpop.f32.mrf.mxu0
  %v1693 = vadd.f32 %v1536, %v1692
  %v1694 = vpop.f32.mrf.mxu0
  %v1695 = vpop.f32.mrf.mxu0
  %v1696 = vadd.f32 %v1536, %v1695
  %v1697 = vpop.f32.mrf.mxu0
  %1698 = vmatprep.mubr.bf16.mxu0 %v1624
  %1699 = vmatmul.mubr.bf16.gmra.mxu0 %v1496
  %v1700 = vpop.f32.mrf.mxu0
  %v1701 = vadd.f32 %v1536, %v1700
  %v1702 = vpop.f32.mrf.mxu0
  %v1703 = vpop.f32.mrf.mxu0
  %v1704 = vadd.f32 %v1536, %v1703
  %v1705 = vpop.f32.mrf.mxu0
  %1706 = vmatprep.mubr.bf16.mxu0 %v1627
  %1707 = vmatmul.mubr.bf16.gmra.mxu0 %v1498
  %v1708 = vpop.f32.mrf.mxu0
  %v1709 = vadd.f32 %v1536, %v1708
  %v1710 = vpop.f32.mrf.mxu0
  %v1711 = vpop.f32.mrf.mxu0
  %v1712 = vadd.f32 %v1536, %v1711
  %v1713 = vpop.f32.mrf.mxu0
  %1714 = vmatprep.mubr.bf16.mxu0 %v1630
  %1715 = vmatmul.mubr.bf16.gmra.mxu0 %v1500
  %v1716 = vpop.f32.mrf.mxu0
  %v1717 = vadd.f32 %v1536, %v1716
  %v1718 = vpop.f32.mrf.mxu0
  %v1719 = vpop.f32.mrf.mxu0
  %v1720 = vadd.f32 %v1536, %v1719
  %v1721 = vpop.f32.mrf.mxu0
  %1722 = vmatprep.mubr.bf16.mxu0 %v1633
  %1723 = vmatmul.mubr.bf16.gmra.mxu0 %v1502
  %v1724 = vpop.f32.mrf.mxu0
  %v1725 = vadd.f32 %v1536, %v1724
  %v1726 = vpop.f32.mrf.mxu0
  %v1727 = vpop.f32.mrf.mxu0
  %v1728 = vadd.f32 %v1536, %v1727
  %v1729 = vpop.f32.mrf.mxu0
  %1730 = vmatprep.mubr.bf16.mxu0 %v1636
  %1731 = vmatmul.mubr.bf16.gmra.mxu0 %v1504
  %v1732 = vpop.f32.mrf.mxu0
  %v1733 = vadd.f32 %v1536, %v1732
  %v1734 = vpop.f32.mrf.mxu0
  %v1735 = vpop.f32.mrf.mxu0
  %v1736 = vadd.f32 %v1536, %v1735
  %v1737 = vpop.f32.mrf.mxu0
  %1738 = vdwg.mxu0
  %vm1739 = vcmp.gt.f32.partialorder %v1677, 0.0
  %vm1740 = vcmp.gt.f32.partialorder %v1680, 0.0
  %vm1741 = vcmp.gt.f32.partialorder %v1685, 0.0
  %vm1742 = vcmp.gt.f32.partialorder %v1688, 0.0
  %vm1743 = vcmp.gt.f32.partialorder %v1693, 0.0
  %vm1744 = vcmp.gt.f32.partialorder %v1696, 0.0
  %vm1745 = vcmp.gt.f32.partialorder %v1701, 0.0
  %vm1746 = vcmp.gt.f32.partialorder %v1704, 0.0
  %vm1747 = vcmp.gt.f32.partialorder %v1709, 0.0
  %vm1748 = vcmp.gt.f32.partialorder %v1712, 0.0
  %vm1749 = vcmp.gt.f32.partialorder %v1717, 0.0
  %vm1750 = vcmp.gt.f32.partialorder %v1720, 0.0
  %vm1751 = vcmp.gt.f32.partialorder %v1725, 0.0
  %vm1752 = vcmp.gt.f32.partialorder %v1728, 0.0
  %vm1753 = vcmp.gt.f32.partialorder %v1733, 0.0
  %vm1754 = vcmp.gt.f32.partialorder %v1736, 0.0
  %v1755 = vmul.f32 %v1677, 0.01
  %v1756 = vmul.f32 %v1680, 0.01
  %v1757 = vmul.f32 %v1685, 0.01
  %v1758 = vmul.f32 %v1688, 0.01
  %v1759 = vmul.f32 %v1693, 0.01
  %v1760 = vmul.f32 %v1696, 0.01
  %v1761 = vmul.f32 %v1701, 0.01
  %v1762 = vmul.f32 %v1704, 0.01
  %v1763 = vmul.f32 %v1709, 0.01
  %v1764 = vmul.f32 %v1712, 0.01
  %v1765 = vmul.f32 %v1717, 0.01
  %v1766 = vmul.f32 %v1720, 0.01
  %v1767 = vmul.f32 %v1725, 0.01
  %v1768 = vmul.f32 %v1728, 0.01
  %v1769 = vmul.f32 %v1733, 0.01
  %v1770 = vmul.f32 %v1736, 0.01
  %v1771 = vsel %vm1739, %v1677, %v1755
  %v1772 = vsel %vm1740, %v1680, %v1756
  %v1773 = vsel %vm1741, %v1685, %v1757
  %v1774 = vsel %vm1742, %v1688, %v1758
  %v1775 = vsel %vm1743, %v1693, %v1759
  %v1776 = vsel %vm1744, %v1696, %v1760
  %v1777 = vsel %vm1745, %v1701, %v1761
  %v1778 = vsel %vm1746, %v1704, %v1762
  %v1779 = vsel %vm1747, %v1709, %v1763
  %v1780 = vsel %vm1748, %v1712, %v1764
  %v1781 = vsel %vm1749, %v1717, %v1765
  %v1782 = vsel %vm1750, %v1720, %v1766
  %v1783 = vsel %vm1751, %v1725, %v1767
  %v1784 = vsel %vm1752, %v1728, %v1768
  %v1785 = vsel %vm1753, %v1733, %v1769
  %v1786 = vsel %vm1754, %v1736, %v1770
  %v1787 = vld [vmem:[%s5] sm:$0x1]
  %v1789 = vlaneseq
  %v1790 = vshrl.u32 %v1789, 7
  %v1791 = vsub.s32 0, %v1790
  %v1792 = vrot.slane %v1787, %v1791
  %v1794 = vmul.f32 %v1771, %v1792
  %v1795 = vmul.f32 %v1772, %v1792
  %v1796 = vmul.f32 %v1773, %v1792
  %v1797 = vmul.f32 %v1774, %v1792
  %v1798 = vmul.f32 %v1775, %v1792
  %v1799 = vmul.f32 %v1776, %v1792
  %v1800 = vmul.f32 %v1777, %v1792
  %v1801 = vmul.f32 %v1778, %v1792
  %v1802 = vmul.f32 %v1779, %v1792
  %v1803 = vmul.f32 %v1780, %v1792
  %v1804 = vmul.f32 %v1781, %v1792
  %v1805 = vmul.f32 %v1782, %v1792
  %v1806 = vmul.f32 %v1783, %v1792
  %v1807 = vmul.f32 %v1784, %v1792
  %v1808 = vmul.f32 %v1785, %v1792
  %v1809 = vmul.f32 %v1786, %v1792
  %vm1810 = vcmask 162816
  %v1811 = vsel %vm1810, %v1794, 0.0
  %1812 = vadd.xlane.f32.xlu0 %v1811
  %v1813 = vpop.xlane.xlu0 %1812
  %v1814 = vsel %vm1810, %v1795, 0.0
  %1815 = vadd.xlane.f32.xlu0 %v1814
  %v1816 = vpop.xlane.xlu0 %1815
  %v1817 = vsel %vm1810, %v1796, 0.0
  %1818 = vadd.xlane.f32.xlu0 %v1817
  %v1819 = vpop.xlane.xlu0 %1818
  %v1820 = vsel %vm1810, %v1797, 0.0
  %1821 = vadd.xlane.f32.xlu0 %v1820
  %v1822 = vpop.xlane.xlu0 %1821
  %v1823 = vsel %vm1810, %v1798, 0.0
  %1824 = vadd.xlane.f32.xlu0 %v1823
  %v1825 = vpop.xlane.xlu0 %1824
  %v1826 = vsel %vm1810, %v1799, 0.0
  %1827 = vadd.xlane.f32.xlu0 %v1826
  %v1828 = vpop.xlane.xlu0 %1827
  %v1829 = vsel %vm1810, %v1800, 0.0
  %1830 = vadd.xlane.f32.xlu0 %v1829
  %v1831 = vpop.xlane.xlu0 %1830
  %v1832 = vsel %vm1810, %v1801, 0.0
  %1833 = vadd.xlane.f32.xlu0 %v1832
  %v1834 = vpop.xlane.xlu0 %1833
  %v1835 = vsel %vm1810, %v1802, 0.0
  %1836 = vadd.xlane.f32.xlu0 %v1835
  %v1837 = vpop.xlane.xlu0 %1836
  %v1838 = vsel %vm1810, %v1803, 0.0
  %1839 = vadd.xlane.f32.xlu0 %v1838
  %v1840 = vpop.xlane.xlu0 %1839
  %v1841 = vsel %vm1810, %v1804, 0.0
  %1842 = vadd.xlane.f32.xlu0 %v1841
  %v1843 = vpop.xlane.xlu0 %1842
  %v1844 = vsel %vm1810, %v1805, 0.0
  %1845 = vadd.xlane.f32.xlu0 %v1844
  %v1846 = vpop.xlane.xlu0 %1845
  %v1847 = vsel %vm1810, %v1806, 0.0
  %1848 = vadd.xlane.f32.xlu0 %v1847
  %v1849 = vpop.xlane.xlu0 %1848
  %v1850 = vsel %vm1810, %v1807, 0.0
  %1851 = vadd.xlane.f32.xlu0 %v1850
  %v1852 = vpop.xlane.xlu0 %1851
  %v1853 = vsel %vm1810, %v1808, 0.0
  %1854 = vadd.xlane.f32.xlu0 %v1853
  %v1855 = vpop.xlane.xlu0 %1854
  %v1856 = vsel %vm1810, %v1809, 0.0
  %1857 = vadd.xlane.f32.xlu0 %v1856
  %v1858 = vpop.xlane.xlu0 %1857
  %s1859 = sld [smem:[#allocation2]]
  %v1860 = vstv %s1859
  %v1861 = vadd.f32 %v1813, %v1860
  %v1862 = vadd.f32 %v1816, %v1860
  %v1863 = vadd.f32 %v1819, %v1860
  %v1864 = vadd.f32 %v1822, %v1860
  %v1865 = vadd.f32 %v1825, %v1860
  %v1866 = vadd.f32 %v1828, %v1860
  %v1867 = vadd.f32 %v1831, %v1860
  %v1868 = vadd.f32 %v1834, %v1860
  %v1869 = vadd.f32 %v1837, %v1860
  %v1870 = vadd.f32 %v1840, %v1860
  %v1871 = vadd.f32 %v1843, %v1860
  %v1872 = vadd.f32 %v1846, %v1860
  %v1873 = vadd.f32 %v1849, %v1860
  %v1874 = vadd.f32 %v1852, %v1860
  %v1875 = vadd.f32 %v1855, %v1860
  %v1876 = vadd.f32 %v1858, %v1860
  %vm1877 = vcmp.gt.f32.partialorder %v1861, 0.0
  %vm1878 = vcmp.gt.f32.partialorder %v1862, 0.0
  %vm1879 = vcmp.gt.f32.partialorder %v1863, 0.0
  %vm1880 = vcmp.gt.f32.partialorder %v1864, 0.0
  %vm1881 = vcmp.gt.f32.partialorder %v1865, 0.0
  %vm1882 = vcmp.gt.f32.partialorder %v1866, 0.0
  %vm1883 = vcmp.gt.f32.partialorder %v1867, 0.0
  %vm1884 = vcmp.gt.f32.partialorder %v1868, 0.0
  %vm1885 = vcmp.gt.f32.partialorder %v1869, 0.0
  %vm1886 = vcmp.gt.f32.partialorder %v1870, 0.0
  %vm1887 = vcmp.gt.f32.partialorder %v1871, 0.0
  %vm1888 = vcmp.gt.f32.partialorder %v1872, 0.0
  %vm1889 = vcmp.gt.f32.partialorder %v1873, 0.0
  %vm1890 = vcmp.gt.f32.partialorder %v1874, 0.0
  %vm1891 = vcmp.gt.f32.partialorder %v1875, 0.0
  %vm1892 = vcmp.gt.f32.partialorder %v1876, 0.0
  %v1893 = vmul.f32 %v1861, 0.01
  %v1894 = vmul.f32 %v1862, 0.01
  %v1895 = vmul.f32 %v1863, 0.01
  %v1896 = vmul.f32 %v1864, 0.01
  %v1897 = vmul.f32 %v1865, 0.01
  %v1898 = vmul.f32 %v1866, 0.01
  %v1899 = vmul.f32 %v1867, 0.01
  %v1900 = vmul.f32 %v1868, 0.01
  %v1901 = vmul.f32 %v1869, 0.01
  %v1902 = vmul.f32 %v1870, 0.01
  %v1903 = vmul.f32 %v1871, 0.01
  %v1904 = vmul.f32 %v1872, 0.01
  %v1905 = vmul.f32 %v1873, 0.01
  %v1906 = vmul.f32 %v1874, 0.01
  %v1907 = vmul.f32 %v1875, 0.01
  %v1908 = vmul.f32 %v1876, 0.01
  %v1909 = vsel %vm1877, %v1861, %v1893
  %v1910 = vsel %vm1878, %v1862, %v1894
  %v1911 = vsel %vm1879, %v1863, %v1895
  %v1912 = vsel %vm1880, %v1864, %v1896
  %v1913 = vsel %vm1881, %v1865, %v1897
  %v1914 = vsel %vm1882, %v1866, %v1898
  %v1915 = vsel %vm1883, %v1867, %v1899
  %v1916 = vsel %vm1884, %v1868, %v1900
  %v1917 = vsel %vm1885, %v1869, %v1901
  %v1918 = vsel %vm1886, %v1870, %v1902
  %v1919 = vsel %vm1887, %v1871, %v1903
  %v1920 = vsel %vm1888, %v1872, %v1904
  %v1921 = vsel %vm1889, %v1873, %v1905
  %v1922 = vsel %vm1890, %v1874, %v1906
  %v1923 = vsel %vm1891, %v1875, %v1907
  %v1924 = vsel %vm1892, %v1876, %v1908
  %v1941 = vlaneseq
  %v1942 = vand.u32 %v1941, 127
  %v1943 = vlaneseq
  %v1944 = vshrl.u32 %v1943, 7
  %v1945 = vsub.s32 %v1942, %v1944
  %v1946 = vrot.slane %v1909, %v1945
  %v1947 = vadd.s32 %v1942, 4294967288
  %v1948 = vlaneseq
  %v1949 = vshrl.u32 %v1948, 7
  %v1950 = vsub.s32 %v1947, %v1949
  %v1951 = vrot.slane %v1910, %v1950
  %vm1952 = vcmask 130112
  %v1953 = vsel %vm1952, %v1951, %v1946
  %v1954 = vadd.s32 %v1942, 4294967280
  %v1955 = vlaneseq
  %v1956 = vshrl.u32 %v1955, 7
  %v1957 = vsub.s32 %v1954, %v1956
  %v1958 = vrot.slane %v1911, %v1957
  %vm1959 = vcmask 195712
  %v1960 = vsel %vm1959, %v1958, %v1953
  %v1961 = vadd.s32 %v1942, 4294967272
  %v1962 = vlaneseq
  %v1963 = vshrl.u32 %v1962, 7
  %v1964 = vsub.s32 %v1961, %v1963
  %v1965 = vrot.slane %v1912, %v1964
  %vm1966 = vcmask 261312
  %v1967 = vsel %vm1966, %v1965, %v1960
  %v1968 = vadd.s32 %v1942, 4294967264
  %v1969 = vlaneseq
  %v1970 = vshrl.u32 %v1969, 7
  %v1971 = vsub.s32 %v1968, %v1970
  %v1972 = vrot.slane %v1913, %v1971
  %vm1973 = vcmask 326912
  %v1974 = vsel %vm1973, %v1972, %v1967
  %v1975 = vadd.s32 %v1942, 4294967256
  %v1976 = vlaneseq
  %v1977 = vshrl.u32 %v1976, 7
  %v1978 = vsub.s32 %v1975, %v1977
  %v1979 = vrot.slane %v1914, %v1978
  %vm1980 = vcmask 392512
  %v1981 = vsel %vm1980, %v1979, %v1974
  %v1982 = vadd.s32 %v1942, 4294967248
  %v1983 = vlaneseq
  %v1984 = vshrl.u32 %v1983, 7
  %v1985 = vsub.s32 %v1982, %v1984
  %v1986 = vrot.slane %v1915, %v1985
  %vm1987 = vcmask 458112
  %v1988 = vsel %vm1987, %v1986, %v1981
  %v1989 = vadd.s32 %v1942, 4294967240
  %v1990 = vlaneseq
  %v1991 = vshrl.u32 %v1990, 7
  %v1992 = vsub.s32 %v1989, %v1991
  %v1993 = vrot.slane %v1916, %v1992
  %vm1994 = vcmask 523712
  %v1995 = vsel %vm1994, %v1993, %v1988
  %v1996 = vadd.s32 %v1942, 4294967232
  %v1997 = vlaneseq
  %v1998 = vshrl.u32 %v1997, 7
  %v1999 = vsub.s32 %v1996, %v1998
  %v2000 = vrot.slane %v1917, %v1999
  %vm2001 = vcmask 589312
  %v2002 = vsel %vm2001, %v2000, %v1995
  %v2003 = vadd.s32 %v1942, 4294967224
  %v2004 = vlaneseq
  %v2005 = vshrl.u32 %v2004, 7
  %v2006 = vsub.s32 %v2003, %v2005
  %v2007 = vrot.slane %v1918, %v2006
  %vm2008 = vcmask 654912
  %v2009 = vsel %vm2008, %v2007, %v2002
  %v2010 = vadd.s32 %v1942, 4294967216
  %v2011 = vlaneseq
  %v2012 = vshrl.u32 %v2011, 7
  %v2013 = vsub.s32 %v2010, %v2012
  %v2014 = vrot.slane %v1919, %v2013
  %vm2015 = vcmask 720512
  %v2016 = vsel %vm2015, %v2014, %v2009
  %v2017 = vadd.s32 %v1942, 4294967208
  %v2018 = vlaneseq
  %v2019 = vshrl.u32 %v2018, 7
  %v2020 = vsub.s32 %v2017, %v2019
  %v2021 = vrot.slane %v1920, %v2020
  %vm2022 = vcmask 786112
  %v2023 = vsel %vm2022, %v2021, %v2016
  %v2024 = vadd.s32 %v1942, 4294967200
  %v2025 = vlaneseq
  %v2026 = vshrl.u32 %v2025, 7
  %v2027 = vsub.s32 %v2024, %v2026
  %v2028 = vrot.slane %v1921, %v2027
  %vm2029 = vcmask 851712
  %v2030 = vsel %vm2029, %v2028, %v2023
  %v2031 = vadd.s32 %v1942, 4294967192
  %v2032 = vlaneseq
  %v2033 = vshrl.u32 %v2032, 7
  %v2034 = vsub.s32 %v2031, %v2033
  %v2035 = vrot.slane %v1922, %v2034
  %vm2036 = vcmask 917312
  %v2037 = vsel %vm2036, %v2035, %v2030
  %v2038 = vadd.s32 %v1942, 4294967184
  %v2039 = vlaneseq
  %v2040 = vshrl.u32 %v2039, 7
  %v2041 = vsub.s32 %v2038, %v2040
  %v2042 = vrot.slane %v1923, %v2041
  %vm2043 = vcmask 982912
  %v2044 = vsel %vm2043, %v2042, %v2037
  %v2045 = vadd.s32 %v1942, 4294967176
  %v2046 = vlaneseq
  %v2047 = vshrl.u32 %v2046, 7
  %v2048 = vsub.s32 %v2045, %v2047
  %v2049 = vrot.slane %v1924, %v2048
  %vm2050 = vcmask 1048512
  %v2051 = vsel %vm2050, %v2049, %v2044
  %2053 = vst [vmem:[%s7] sm:$0x1] %v2051
  // Predicated region
  $region30: #{binary_classification_forward.1} parent=0 // pred_check
    _
  $region31: #{binary_classification_forward.1} parent=0 // pred_check_branch
    %2055 = sbr.rel (0) target = $region33
  $region32: #{binary_classification_forward.1} parent=0 // pred_region
    _
  $region33: #{binary_classification_forward.1} parent=0 // pred_fallthru
    _
  // Predicated region
  $region34: #{binary_classification_forward.1} parent=0 // pred_check
    _
  $region35: #{binary_classification_forward.1} parent=0 // pred_check_branch
    %2057 = sbr.rel (0) target = $region37
  $region36: #{binary_classification_forward.1} parent=0 // pred_region
    _
  $region37: #{binary_classification_forward.1} parent=0 // pred_fallthru
    _

</llo_original>
